<compile_context>
chip_gen: v5e
topology: v5e:2x2
jax: 0.10.0
libtpu: 0.0.40
codegen_flags: <defaults>
</compile_context>

<pallas_src>
from functools import partial

import numpy as np
import jax
import jax.numpy as jnp
from jax.experimental import pallas as pl
from jax.experimental.pallas import tpu as pltpu

MIN_DEPTH = 1.0
MAX_DEPTH = 100.0
DEPTH_RANGE = MAX_DEPTH - MIN_DEPTH
LANES = 128
_MAGIC = 12582912.0  # 1.5 * 2**23 -> round-to-nearest-even, exact for |x| < 2**22


def _round_ties_even(x):
    # torch.round semantics (ties to even) in two VALU ops.
    return (x + _MAGIC) - _MAGIC


def _choose_rows(nr, max_rows):
    """Pick the sublane-row tile R and the (possibly padded) row count NR_pad."""
    max_rows = max(8, (int(max_rows) // 8) * 8)
    if nr <= max_rows:
        return nr, nr                       # full-extent block is always legal (small inputs)
    r = max_rows
    while r >= 256:                         # prefer an R that divides NR exactly (no padding)
        if nr % r == 0:
            return r, nr
        r -= 8
    r = max_rows                            # otherwise pad NR to a multiple of max_rows
    nr_pad = ((nr + r - 1) // r) * r
    return r, nr_pad


def _make_main_kernel(xi, height, width, rows):
    xi = float(xi)
    Hf = float(height)
    Wf = float(width)
    inv_w = 1.0 / Wf
    inv_wm1 = 1.0 / (Wf - 1.0)
    inv_hm1 = 1.0 / (Hf - 1.0)
    inv_range = 1.0 / DEPTH_RANGE
    blk_pix = rows * LANES

    def kernel(invK_ref, K_ref, T_ref,                 # SMEM (B,9)/(B,9)/(B,12)
               depth_ref, nc_ref, mask_ref,            # VMEM pixel tiles
               pcc_ref, map_ref, preA_ref, w2_ref, x2min_ref):
        t = pl.program_id(0)
        b = pl.program_id(1)

        # inv_K[:3, :3]
        a00 = invK_ref[b, 0]; a01 = invK_ref[b, 1]; a02 = invK_ref[b, 2]
        a10 = invK_ref[b, 3]; a11 = invK_ref[b, 4]; a12 = invK_ref[b, 5]
        a20 = invK_ref[b, 6]; a21 = invK_ref[b, 7]; a22 = invK_ref[b, 8]
        # K[:3, :3] (row 2 only feeds p_z, never consumed downstream -> dropped)
        k00 = K_ref[b, 0]; k01 = K_ref[b, 1]; k02 = K_ref[b, 2]
        k10 = K_ref[b, 3]; k11 = K_ref[b, 4]; k12 = K_ref[b, 5]
        # T = [R | t]
        r00 = T_ref[b, 0]; r01 = T_ref[b, 1]; r02 = T_ref[b, 2]
        r10 = T_ref[b, 3]; r11 = T_ref[b, 4]; r12 = T_ref[b, 5]
        r20 = T_ref[b, 6]; r21 = T_ref[b, 7]; r22 = T_ref[b, 8]
        t0 = T_ref[b, 9]; t1 = T_ref[b, 10]; t2 = T_ref[b, 11]

        d = depth_ref[0, :, :]
        nc = nc_ref[0, :, :]
        outside = mask_ref[:, :]            # 1.0 -> outside circle (batch-0 mask)

        # Pixel coordinates generated in-kernel (no HBM streams for u/v).
        base = (t * blk_pix).astype(jnp.float32)
        row = jax.lax.broadcasted_iota(jnp.int32, (rows, LANES), 0).astype(jnp.float32)
        lane = jax.lax.broadcasted_iota(jnp.int32, (rows, LANES), 1).astype(jnp.float32)
        pix = base + row * float(LANES) + lane
        v = jnp.floor((pix + 0.5) * inv_w)          # row coordinate
        u = pix - v * Wf                            # column coordinate
        # one-step fix-up keeps u/v exact even for very large pixel counts
        v = jnp.where(u < 0.0, v - 1.0, jnp.where(u >= Wf, v + 1.0, v))
        u = jnp.where(u < 0.0, u + Wf, jnp.where(u >= Wf, u - Wf, u))

        # ray = inv_K[:3,:3] @ [u, v, 1]
        ray_x = a00 * u + a01 * v + a02
        ray_y = a10 * u + a11 * v + a12
        ray_z = a20 * u + a21 * v + a22

        # ncray = nc * ray.  With MIN_DEPTH == 1:
        #   x_1_min = x_2_min = ncray,  x_1_max = x_2_max = 100 * ncray.
        nrx = nc * ray_x
        nry = nc * ray_y
        nrz = nc * ray_z

        # x_s1 = depth * ncray - (depth - 1) * t_xi ,  t_xi = (0, 0, xi)
        xs1_x = d * nrx
        xs1_y = d * nry
        xs1_z = d * nrz - (d - 1.0) * xi

        # x_1 = x_s1 - t_xi
        x1_z = xs1_z - xi
        x1_norm = jnp.sqrt(xs1_x * xs1_x + xs1_y * xs1_y + x1_z * x1_z)

        # R @ x_s1 + t
        rxs1_x = r00 * xs1_x + r01 * xs1_y + r02 * xs1_z + t0
        rxs1_y = r10 * xs1_x + r11 * xs1_y + r12 * xs1_z + t1
        rxs1_z = r20 * xs1_x + r21 * xs1_y + r22 * xs1_z + t2

        # x_2 = R @ x_s1 + t - t_xi
        x2_z = rxs1_z - xi
        x2_norm = jnp.sqrt(rxs1_x * rxs1_x + rxs1_y * rxs1_y + x2_z * x2_z)

        alpha1 = (x1_norm - MIN_DEPTH) * inv_range
        alpha2 = (x2_norm - MIN_DEPTH) * inv_range

        # Rm = R @ ncray ; (1-a1)*(Rm+t) + a1*(100*Rm+t) == (1 + 99*a1)*Rm + t
        rm_x = r00 * nrx + r01 * nry + r02 * nrz
        rm_y = r10 * nrx + r11 * nry + r12 * nrz
        rm_z = r20 * nrx + r21 * nry + r22 * nrz
        w1 = 1.0 + DEPTH_RANGE * alpha1

        # x_2_dash = R @ x_s1 + t + (||x_2|| - 1) * t_xi
        x2d_x = rxs1_x
        x2d_y = rxs1_y
        x2d_z = rxs1_z + (x2_norm - 1.0) * xi

        # 1/z on the EUP + one Newton step for full f32 accuracy.
        # TODO(synk): x2d_z <= 0 (points behind camera) gives inf, same hazard
        # as the torch divide; no clamp added to preserve reference semantics.
        inv_z = pl.reciprocal(x2d_z, approx=True)
        inv_z = inv_z * (2.0 - x2d_z * inv_z)

        # p_2_tilde (x, y only; z channel is never consumed downstream)
        p_x = (k00 * x2d_x + k01 * x2d_y + k02 * x2d_z) * inv_z
        p_y = (k10 * x2d_x + k11 * x2d_y + k12 * x2d_z) * inv_z

        # p_2_tilde[:, :, outside] = pix_coords[:, :, outside]
        is_out = outside > 0.5
        p_x = jnp.where(is_out, u, p_x)
        p_y = jnp.where(is_out, v, p_y)

        # Normalized pixel coordinates: (p / (dim-1) - 0.5) * 2
        pcc_ref[0, 0, :, :] = (p_x * inv_wm1 - 0.5) * 2.0
        pcc_ref[0, 1, :, :] = (p_y * inv_hm1 - 0.5) * 2.0

        # Pixel index mapping: round(p_x) + round(p_y) * height
        # (the torch reference multiplies by self.height; kept as-is).
        map_ref[0, :, :] = (
            _round_ties_even(p_x) + _round_ties_even(p_y) * Hf
        ).astype(jnp.int32)

        # preA = (1 - alpha_1) * x_s2_1_min + alpha_1 * x_s2_1_max  (channel-major)
        preA_ref[0, 0, :, :] = w1 * rm_x + t0
        preA_ref[1, 0, :, :] = w1 * rm_y + t1
        preA_ref[2, 0, :, :] = w1 * rm_z + t2

        # w2 = (1 - a2) + 100*a2  (x_2_max == 100 * x_2_min folded in)
        w2_ref[0, :, :] = 1.0 + DEPTH_RANGE * alpha2

        # x_2_min, channel-major so the downstream gather needs no transpose.
        x2min_ref[0, 0, :, :] = nrx
        x2min_ref[1, 0, :, :] = nry
        x2min_ref[2, 0, :, :] = nrz

    return kernel


def omni_dibr_setup(norm_solution_area):
    """One-time host precompute of the batch-0 inside/outside masks."""
    area = np.asarray(norm_solution_area)
    area0 = area.reshape(area.shape[0], -1)[0]
    outside = np.logical_or(area0 == 0, area0 == -1).astype(np.float32)
    inside_idx = np.nonzero(area0 == 1)[0].astype(np.int32)
    return jnp.asarray(outside), jnp.asarray(inside_idx)


@partial(jax.jit, static_argnames=("xi", "height", "width", "max_block_rows"))
def omni_dibr_forward(depth, inv_K, K, norm_coeffs, T, outside_mask, inside_idx,
                      *, xi, height, width, max_block_rows=512):
    B = depth.shape[0]
    HW = height * width
    assert HW % LANES == 0, "H*W must be a multiple of 128"
    NR = HW // LANES
    R, NR_pad = _choose_rows(NR, max_block_rows)
    n_tiles = NR_pad // R
    HW_pad = NR_pad * LANES

    depth_r = jnp.asarray(depth, jnp.float32).reshape(B, NR, LANES)
    nc_r = jnp.asarray(norm_coeffs, jnp.float32).reshape(B, NR, LANES)
    mask_r = jnp.asarray(outside_mask, jnp.float32).reshape(NR, LANES)
    if NR_pad != NR:
        pad = NR_pad - NR
        depth_r = jnp.pad(depth_r, ((0, 0), (0, pad), (0, 0)), constant_values=1.0)
        nc_r = jnp.pad(nc_r, ((0, 0), (0, pad), (0, 0)), constant_values=0.0)
        mask_r = jnp.pad(mask_r, ((0, pad), (0, 0)), constant_values=1.0)  # pad = "outside"

    invK_flat = jnp.asarray(inv_K, jnp.float32)[:, :3, :3].reshape(B, 9)
    K_flat = jnp.asarray(K, jnp.float32)[:, :3, :3].reshape(B, 9)
    Tj = jnp.asarray(T, jnp.float32)
    T_flat = jnp.concatenate(
        [Tj[:, :3, :3].reshape(B, 9), Tj[:, :3, 3].reshape(B, 3)], axis=1)  # (B, 12)

    smem_spec = pl.BlockSpec(memory_space=pltpu.MemorySpace.SMEM)
    spec_pix = pl.BlockSpec((1, R, LANES), lambda t, b: (b, t, 0))
    spec_mask = pl.BlockSpec((R, LANES), lambda t, b: (t, 0))        # shared across batch
    spec_pcc = pl.BlockSpec((1, 2, R, LANES), lambda t, b: (b, 0, t, 0))
    spec_cmaj3 = pl.BlockSpec((3, 1, R, LANES), lambda t, b: (0, b, t, 0))

    out_shapes = (
        jax.ShapeDtypeStruct((B, 2, NR_pad, LANES), jnp.float32),    # normalized pix coords
        jax.ShapeDtypeStruct((B, NR_pad, LANES), jnp.int32),         # pixel index mapping
        jax.ShapeDtypeStruct((3, B, NR_pad, LANES), jnp.float32),    # (1+99*a1)*Rm + t
        jax.ShapeDtypeStruct((B, NR_pad, LANES), jnp.float32),       # w2 = 1 + 99*a2
        jax.ShapeDtypeStruct((3, B, NR_pad, LANES), jnp.float32),    # x_2_min (channel-major)
    )

    # Batch is the innermost grid axis so the shared outside-mask tile is only
    # DMA'd once per pixel tile.  Both axes are parallel (megacore / v7x 2-TC).
    pcc, mapping, preA, w2, x2min = pl.pallas_call(
        _make_main_kernel(xi, height, width, R),
        grid=(n_tiles, B),
        in_specs=[smem_spec, smem_spec, smem_spec, spec_pix, spec_pix, spec_mask],
        out_specs=(spec_pcc, spec_pix, spec_cmaj3, spec_pix, spec_cmaj3),
        out_shape=out_shapes,
        compiler_params=pltpu.CompilerParams(
            dimension_semantics=("parallel", "parallel"),
            vmem_limit_bytes=32 * 1024 * 1024),
    )(invK_flat, K_flat, T_flat, depth_r, nc_r, mask_r)

    # TODO(synk): data-dependent gather (pixel_index_mapping) has no clean
    # Pallas lane-gather equivalent; kept as an XLA gather.  jnp.take clamps
    # out-of-range indices (torch would error), matching the previous version.
    mapping_f = mapping.reshape(B, HW_pad)
    flat_idx = mapping_f + (jnp.arange(B, dtype=jnp.int32) * HW_pad)[:, None]
    x2min_g = jnp.take(x2min.reshape(3, B * HW_pad), flat_idx.reshape(-1),
                       axis=1).reshape(3, B, HW_pad)

    # curved = preA - ((1-a2)*x2min_g + a2*x2max_g)  with x2max == 100*x2min,
    # kept channel-major until after the (small) inside-circle selection.
    curved = preA.reshape(3, B, HW_pad) - x2min_g * w2.reshape(B, HW_pad)[None]
    curved_inside = jnp.transpose(jnp.take(curved, inside_idx, axis=2), (1, 0, 2))

    # pix_coords_converted: (B, H, W, 2) normalized coordinates (f32 kept to
    # preserve reference semantics; bf16 downcast is a possible further win).
    pcc_valid = pcc[:, :, :NR, :]
    pix_coords_converted = pcc_valid.reshape(B, 2, height, width).transpose(0, 2, 3, 1)
    return pix_coords_converted, curved_inside


if __name__ == "__main__":
    # The torch module hard-codes `depth.view((8, -1))`, implying batch_size == 8.
    B, H, W = 8, 16, 16
    xi = 0.5

    key = jax.random.PRNGKey(0)
    k1, k2, k3 = jax.random.split(key, 3)
    depth = jax.random.uniform(k1, (B, 1, H, W), jnp.float32, 1.0, 10.0)
    norm_coeffs = jax.random.uniform(k2, (B, H, W), jnp.float32, 0.8, 1.2)
    norm_solution_area = jax.random.randint(k3, (B, H, W), -1, 2).astype(jnp.float32)

    f = float(W) / 2.0
    cx, cy = (W - 1) / 2.0, (H - 1) / 2.0
    K3 = np.array([[f, 0.0, cx], [0.0, f, cy], [0.0, 0.0, 1.0]], np.float32)
    K4 = np.eye(4, dtype=np.float32); K4[:3, :3] = K3
    invK4 = np.eye(4, dtype=np.float32); invK4[:3, :3] = np.linalg.inv(K3)
    K = jnp.asarray(np.tile(K4[None], (B, 1, 1)))
    inv_K = jnp.asarray(np.tile(invK4[None], (B, 1, 1)))
    T4 = np.eye(4, dtype=np.float32)
    T4[:3, 3] = np.array([0.1, 0.05, 0.02], np.float32)
    T = jnp.asarray(np.tile(T4[None], (B, 1, 1)))

    # One-time host-side mask / inside-index precompute (hoisted out of the hot path).
    outside_mask, inside_idx = omni_dibr_setup(norm_solution_area)

    pix_coords_converted, curved_epipolar_constraint = omni_dibr_forward(
        depth, inv_K, K, norm_coeffs, T, outside_mask, inside_idx,
        xi=xi, height=H, width=W)
    jax.block_until_ready((pix_coords_converted, curved_epipolar_constraint))

    assert pix_coords_converted.shape == (B, H, W, 2)
    assert curved_epipolar_constraint.shape[:2] == (B, 3)
    assert curved_epipolar_constraint.shape[2] == int(inside_idx.shape[0])
    print("KERNEL_OK")
</pallas_src>

<mosaic_0001>
module attributes {stable_mosaic.version = 11 : i64} {
  func.func @kernel(%arg0: i32, %arg1: i32, %arg2: memref<8x9xf32, #tpu.memory_space<smem>>, %arg3: memref<8x9xf32, #tpu.memory_space<smem>>, %arg4: memref<8x12xf32, #tpu.memory_space<smem>>, %arg5: memref<1x2x128xf32, #tpu.memory_space<vmem>>, %arg6: memref<1x2x128xf32, #tpu.memory_space<vmem>>, %arg7: memref<2x128xf32, #tpu.memory_space<vmem>>, %arg8: memref<1x2x2x128xf32, #tpu.memory_space<vmem>>, %arg9: memref<1x2x128xi32, #tpu.memory_space<vmem>>, %arg10: memref<3x1x2x128xf32, #tpu.memory_space<vmem>>, %arg11: memref<1x2x128xf32, #tpu.memory_space<vmem>>, %arg12: memref<3x1x2x128xf32, #tpu.memory_space<vmem>>) attributes {dimension_semantics = [#tpu.dimension_semantics<parallel>, #tpu.dimension_semantics<parallel>], iteration_bounds = array<i64: 1, 8>, scalar_prefetch = 0 : i64, scratch_operands = 0 : i64, tpu.core_type = #tpu.core_type<tc>, window_params = [{transform_indices = @transform_0, window_bounds = array<i64: 8, 9>}, {transform_indices = @transform_1, window_bounds = array<i64: 8, 9>}, {transform_indices = @transform_2, window_bounds = array<i64: 8, 12>}, {transform_indices = @transform_3, window_bounds = array<i64: 1, 2, 128>}, {transform_indices = @transform_4, window_bounds = array<i64: 1, 2, 128>}, {transform_indices = @transform_5, window_bounds = array<i64: 2, 128>}, {transform_indices = @transform_6, window_bounds = array<i64: 1, 2, 2, 128>}, {transform_indices = @transform_7, window_bounds = array<i64: 1, 2, 128>}, {transform_indices = @transform_8, window_bounds = array<i64: 3, 1, 2, 128>}, {transform_indices = @transform_9, window_bounds = array<i64: 1, 2, 128>}, {transform_indices = @transform_10, window_bounds = array<i64: 3, 1, 2, 128>}]} {
    %0 = arith.index_cast %arg1 : i32 to index
    %c0 = arith.constant 0 : index
    %1 = memref.load %arg2[%0, %c0] : memref<8x9xf32, #tpu.memory_space<smem>>
    %2 = arith.index_cast %arg1 : i32 to index
    %c1 = arith.constant 1 : index
    %3 = memref.load %arg2[%2, %c1] : memref<8x9xf32, #tpu.memory_space<smem>>
    %4 = arith.index_cast %arg1 : i32 to index
    %c2 = arith.constant 2 : index
    %5 = memref.load %arg2[%4, %c2] : memref<8x9xf32, #tpu.memory_space<smem>>
    %6 = arith.index_cast %arg1 : i32 to index
    %c3 = arith.constant 3 : index
    %7 = memref.load %arg2[%6, %c3] : memref<8x9xf32, #tpu.memory_space<smem>>
    %8 = arith.index_cast %arg1 : i32 to index
    %c4 = arith.constant 4 : index
    %9 = memref.load %arg2[%8, %c4] : memref<8x9xf32, #tpu.memory_space<smem>>
    %10 = arith.index_cast %arg1 : i32 to index
    %c5 = arith.constant 5 : index
    %11 = memref.load %arg2[%10, %c5] : memref<8x9xf32, #tpu.memory_space<smem>>
    %12 = arith.index_cast %arg1 : i32 to index
    %c6 = arith.constant 6 : index
    %13 = memref.load %arg2[%12, %c6] : memref<8x9xf32, #tpu.memory_space<smem>>
    %14 = arith.index_cast %arg1 : i32 to index
    %c7 = arith.constant 7 : index
    %15 = memref.load %arg2[%14, %c7] : memref<8x9xf32, #tpu.memory_space<smem>>
    %16 = arith.index_cast %arg1 : i32 to index
    %c8 = arith.constant 8 : index
    %17 = memref.load %arg2[%16, %c8] : memref<8x9xf32, #tpu.memory_space<smem>>
    %18 = arith.index_cast %arg1 : i32 to index
    %c0_0 = arith.constant 0 : index
    %19 = memref.load %arg3[%18, %c0_0] : memref<8x9xf32, #tpu.memory_space<smem>>
    %20 = arith.index_cast %arg1 : i32 to index
    %c1_1 = arith.constant 1 : index
    %21 = memref.load %arg3[%20, %c1_1] : memref<8x9xf32, #tpu.memory_space<smem>>
    %22 = arith.index_cast %arg1 : i32 to index
    %c2_2 = arith.constant 2 : index
    %23 = memref.load %arg3[%22, %c2_2] : memref<8x9xf32, #tpu.memory_space<smem>>
    %24 = arith.index_cast %arg1 : i32 to index
    %c3_3 = arith.constant 3 : index
    %25 = memref.load %arg3[%24, %c3_3] : memref<8x9xf32, #tpu.memory_space<smem>>
    %26 = arith.index_cast %arg1 : i32 to index
    %c4_4 = arith.constant 4 : index
    %27 = memref.load %arg3[%26, %c4_4] : memref<8x9xf32, #tpu.memory_space<smem>>
    %28 = arith.index_cast %arg1 : i32 to index
    %c5_5 = arith.constant 5 : index
    %29 = memref.load %arg3[%28, %c5_5] : memref<8x9xf32, #tpu.memory_space<smem>>
    %30 = arith.index_cast %arg1 : i32 to index
    %c0_6 = arith.constant 0 : index
    %31 = memref.load %arg4[%30, %c0_6] : memref<8x12xf32, #tpu.memory_space<smem>>
    %32 = arith.index_cast %arg1 : i32 to index
    %c1_7 = arith.constant 1 : index
    %33 = memref.load %arg4[%32, %c1_7] : memref<8x12xf32, #tpu.memory_space<smem>>
    %34 = arith.index_cast %arg1 : i32 to index
    %c2_8 = arith.constant 2 : index
    %35 = memref.load %arg4[%34, %c2_8] : memref<8x12xf32, #tpu.memory_space<smem>>
    %36 = arith.index_cast %arg1 : i32 to index
    %c3_9 = arith.constant 3 : index
    %37 = memref.load %arg4[%36, %c3_9] : memref<8x12xf32, #tpu.memory_space<smem>>
    %38 = arith.index_cast %arg1 : i32 to index
    %c4_10 = arith.constant 4 : index
    %39 = memref.load %arg4[%38, %c4_10] : memref<8x12xf32, #tpu.memory_space<smem>>
    %40 = arith.index_cast %arg1 : i32 to index
    %c5_11 = arith.constant 5 : index
    %41 = memref.load %arg4[%40, %c5_11] : memref<8x12xf32, #tpu.memory_space<smem>>
    %42 = arith.index_cast %arg1 : i32 to index
    %c6_12 = arith.constant 6 : index
    %43 = memref.load %arg4[%42, %c6_12] : memref<8x12xf32, #tpu.memory_space<smem>>
    %44 = arith.index_cast %arg1 : i32 to index
    %c7_13 = arith.constant 7 : index
    %45 = memref.load %arg4[%44, %c7_13] : memref<8x12xf32, #tpu.memory_space<smem>>
    %46 = arith.index_cast %arg1 : i32 to index
    %c8_14 = arith.constant 8 : index
    %47 = memref.load %arg4[%46, %c8_14] : memref<8x12xf32, #tpu.memory_space<smem>>
    %48 = arith.index_cast %arg1 : i32 to index
    %c9 = arith.constant 9 : index
    %49 = memref.load %arg4[%48, %c9] : memref<8x12xf32, #tpu.memory_space<smem>>
    %50 = arith.index_cast %arg1 : i32 to index
    %c10 = arith.constant 10 : index
    %51 = memref.load %arg4[%50, %c10] : memref<8x12xf32, #tpu.memory_space<smem>>
    %52 = arith.index_cast %arg1 : i32 to index
    %c11 = arith.constant 11 : index
    %53 = memref.load %arg4[%52, %c11] : memref<8x12xf32, #tpu.memory_space<smem>>
    %c0_15 = arith.constant 0 : index
    %c0_16 = arith.constant 0 : index
    %c0_17 = arith.constant 0 : index
    %54 = vector.load %arg5[%c0_15, %c0_16, %c0_17] : memref<1x2x128xf32, #tpu.memory_space<vmem>>, vector<1x2x128xf32>
    %55 = vector.shape_cast %54 : vector<1x2x128xf32> to vector<2x128xf32>
    %c0_18 = arith.constant 0 : index
    %c0_19 = arith.constant 0 : index
    %c0_20 = arith.constant 0 : index
    %56 = vector.load %arg6[%c0_18, %c0_19, %c0_20] : memref<1x2x128xf32, #tpu.memory_space<vmem>>, vector<1x2x128xf32>
    %57 = vector.shape_cast %56 : vector<1x2x128xf32> to vector<2x128xf32>
    %c0_21 = arith.constant 0 : index
    %c0_22 = arith.constant 0 : index
    %58 = vector.load %arg7[%c0_21, %c0_22] : memref<2x128xf32, #tpu.memory_space<vmem>>, vector<2x128xf32>
    %c256_i32 = arith.constant 256 : i32
    %59 = arith.muli %arg0, %c256_i32 : i32
    %60 = arith.sitofp %59 : i32 to f32
    %61 = tpu.iota {dimensions = array<i32: 0>} : vector<2x128xi32>
    %62 = arith.sitofp %61 : vector<2x128xi32> to vector<2x128xf32>
    %63 = tpu.iota {dimensions = array<i32: 1>} : vector<2x128xi32>
    %64 = arith.sitofp %63 : vector<2x128xi32> to vector<2x128xf32>
    %cst = arith.constant 1.280000e+02 : f32
    %65 = vector.broadcast %cst : f32 to vector<2x128xf32>
    %66 = arith.mulf %62, %65 : vector<2x128xf32>
    %67 = vector.broadcast %60 : f32 to vector<2x128xf32>
    %68 = arith.addf %67, %66 : vector<2x128xf32>
    %69 = arith.addf %68, %64 : vector<2x128xf32>
    %cst_23 = arith.constant 5.000000e-01 : f32
    %70 = vector.broadcast %cst_23 : f32 to vector<2x128xf32>
    %71 = arith.addf %69, %70 : vector<2x128xf32>
    %cst_24 = arith.constant 6.250000e-02 : f32
    %72 = vector.broadcast %cst_24 : f32 to vector<2x128xf32>
    %73 = arith.mulf %71, %72 : vector<2x128xf32>
    %74 = math.floor %73 : vector<2x128xf32>
    %cst_25 = arith.constant 1.600000e+01 : f32
    %75 = vector.broadcast %cst_25 : f32 to vector<2x128xf32>
    %76 = arith.mulf %74, %75 : vector<2x128xf32>
    %77 = arith.subf %69, %76 : vector<2x128xf32>
    %cst_26 = arith.constant 0.000000e+00 : f32
    %78 = vector.broadcast %cst_26 : f32 to vector<2x128xf32>
    %79 = arith.cmpf olt, %77, %78 : vector<2x128xf32>
    %cst_27 = arith.constant 1.000000e+00 : f32
    %80 = vector.broadcast %cst_27 : f32 to vector<2x128xf32>
    %81 = arith.subf %74, %80 : vector<2x128xf32>
    %cst_28 = arith.constant 1.600000e+01 : f32
    %82 = vector.broadcast %cst_28 : f32 to vector<2x128xf32>
    %83 = arith.cmpf oge, %77, %82 : vector<2x128xf32>
    %cst_29 = arith.constant 1.000000e+00 : f32
    %84 = vector.broadcast %cst_29 : f32 to vector<2x128xf32>
    %85 = arith.addf %74, %84 : vector<2x128xf32>
    %86 = arith.select %83, %85, %74 : vector<2x128xi1>, vector<2x128xf32>
    %87 = arith.select %79, %81, %86 : vector<2x128xi1>, vector<2x128xf32>
    %cst_30 = arith.constant 0.000000e+00 : f32
    %88 = vector.broadcast %cst_30 : f32 to vector<2x128xf32>
    %89 = arith.cmpf olt, %77, %88 : vector<2x128xf32>
    %cst_31 = arith.constant 1.600000e+01 : f32
    %90 = vector.broadcast %cst_31 : f32 to vector<2x128xf32>
    %91 = arith.addf %77, %90 : vector<2x128xf32>
    %cst_32 = arith.constant 1.600000e+01 : f32
    %92 = vector.broadcast %cst_32 : f32 to vector<2x128xf32>
    %93 = arith.cmpf oge, %77, %92 : vector<2x128xf32>
    %cst_33 = arith.constant 1.600000e+01 : f32
    %94 = vector.broadcast %cst_33 : f32 to vector<2x128xf32>
    %95 = arith.subf %77, %94 : vector<2x128xf32>
    %96 = arith.select %93, %95, %77 : vector<2x128xi1>, vector<2x128xf32>
    %97 = arith.select %89, %91, %96 : vector<2x128xi1>, vector<2x128xf32>
    %98 = vector.broadcast %1 : f32 to vector<2x128xf32>
    %99 = arith.mulf %98, %97 : vector<2x128xf32>
    %100 = vector.broadcast %3 : f32 to vector<2x128xf32>
    %101 = arith.mulf %100, %87 : vector<2x128xf32>
    %102 = arith.addf %99, %101 : vector<2x128xf32>
    %103 = vector.broadcast %5 : f32 to vector<2x128xf32>
    %104 = arith.addf %102, %103 : vector<2x128xf32>
    %105 = vector.broadcast %7 : f32 to vector<2x128xf32>
    %106 = arith.mulf %105, %97 : vector<2x128xf32>
    %107 = vector.broadcast %9 : f32 to vector<2x128xf32>
    %108 = arith.mulf %107, %87 : vector<2x128xf32>
    %109 = arith.addf %106, %108 : vector<2x128xf32>
    %110 = vector.broadcast %11 : f32 to vector<2x128xf32>
    %111 = arith.addf %109, %110 : vector<2x128xf32>
    %112 = vector.broadcast %13 : f32 to vector<2x128xf32>
    %113 = arith.mulf %112, %97 : vector<2x128xf32>
    %114 = vector.broadcast %15 : f32 to vector<2x128xf32>
    %115 = arith.mulf %114, %87 : vector<2x128xf32>
    %116 = arith.addf %113, %115 : vector<2x128xf32>
    %117 = vector.broadcast %17 : f32 to vector<2x128xf32>
    %118 = arith.addf %116, %117 : vector<2x128xf32>
    %119 = arith.mulf %57, %104 : vector<2x128xf32>
    %120 = arith.mulf %57, %111 : vector<2x128xf32>
    %121 = arith.mulf %57, %118 : vector<2x128xf32>
    %122 = arith.mulf %55, %119 : vector<2x128xf32>
    %123 = arith.mulf %55, %120 : vector<2x128xf32>
    %124 = arith.mulf %55, %121 : vector<2x128xf32>
    %cst_34 = arith.constant 1.000000e+00 : f32
    %125 = vector.broadcast %cst_34 : f32 to vector<2x128xf32>
    %126 = arith.subf %55, %125 : vector<2x128xf32>
    %cst_35 = arith.constant 5.000000e-01 : f32
    %127 = vector.broadcast %cst_35 : f32 to vector<2x128xf32>
    %128 = arith.mulf %126, %127 : vector<2x128xf32>
    %129 = arith.subf %124, %128 : vector<2x128xf32>
    %cst_36 = arith.constant 5.000000e-01 : f32
    %130 = vector.broadcast %cst_36 : f32 to vector<2x128xf32>
    %131 = arith.subf %129, %130 : vector<2x128xf32>
    %132 = arith.mulf %122, %122 : vector<2x128xf32>
    %133 = arith.mulf %123, %123 : vector<2x128xf32>
    %134 = arith.addf %132, %133 : vector<2x128xf32>
    %135 = arith.mulf %131, %131 : vector<2x128xf32>
    %136 = arith.addf %134, %135 : vector<2x128xf32>
    %137 = math.sqrt %136 : vector<2x128xf32>
    %138 = vector.broadcast %31 : f32 to vector<2x128xf32>
    %139 = arith.mulf %138, %122 : vector<2x128xf32>
    %140 = vector.broadcast %33 : f32 to vector<2x128xf32>
    %141 = arith.mulf %140, %123 : vector<2x128xf32>
    %142 = arith.addf %139, %141 : vector<2x128xf32>
    %143 = vector.broadcast %35 : f32 to vector<2x128xf32>
    %144 = arith.mulf %143, %129 : vector<2x128xf32>
    %145 = arith.addf %142, %144 : vector<2x128xf32>
    %146 = vector.broadcast %49 : f32 to vector<2x128xf32>
    %147 = arith.addf %145, %146 : vector<2x128xf32>
    %148 = vector.broadcast %37 : f32 to vector<2x128xf32>
    %149 = arith.mulf %148, %122 : vector<2x128xf32>
    %150 = vector.broadcast %39 : f32 to vector<2x128xf32>
    %151 = arith.mulf %150, %123 : vector<2x128xf32>
    %152 = arith.addf %149, %151 : vector<2x128xf32>
    %153 = vector.broadcast %41 : f32 to vector<2x128xf32>
    %154 = arith.mulf %153, %129 : vector<2x128xf32>
    %155 = arith.addf %152, %154 : vector<2x128xf32>
    %156 = vector.broadcast %51 : f32 to vector<2x128xf32>
    %157 = arith.addf %155, %156 : vector<2x128xf32>
    %158 = vector.broadcast %43 : f32 to vector<2x128xf32>
    %159 = arith.mulf %158, %122 : vector<2x128xf32>
    %160 = vector.broadcast %45 : f32 to vector<2x128xf32>
    %161 = arith.mulf %160, %123 : vector<2x128xf32>
    %162 = arith.addf %159, %161 : vector<2x128xf32>
    %163 = vector.broadcast %47 : f32 to vector<2x128xf32>
    %164 = arith.mulf %163, %129 : vector<2x128xf32>
    %165 = arith.addf %162, %164 : vector<2x128xf32>
    %166 = vector.broadcast %53 : f32 to vector<2x128xf32>
    %167 = arith.addf %165, %166 : vector<2x128xf32>
    %cst_37 = arith.constant 5.000000e-01 : f32
    %168 = vector.broadcast %cst_37 : f32 to vector<2x128xf32>
    %169 = arith.subf %167, %168 : vector<2x128xf32>
    %170 = arith.mulf %147, %147 : vector<2x128xf32>
    %171 = arith.mulf %157, %157 : vector<2x128xf32>
    %172 = arith.addf %170, %171 : vector<2x128xf32>
    %173 = arith.mulf %169, %169 : vector<2x128xf32>
    %174 = arith.addf %172, %173 : vector<2x128xf32>
    %175 = math.sqrt %174 : vector<2x128xf32>
    %cst_38 = arith.constant 1.000000e+00 : f32
    %176 = vector.broadcast %cst_38 : f32 to vector<2x128xf32>
    %177 = arith.subf %137, %176 : vector<2x128xf32>
    %cst_39 = arith.constant 0.0101010101 : f32
    %178 = vector.broadcast %cst_39 : f32 to vector<2x128xf32>
    %179 = arith.mulf %177, %178 : vector<2x128xf32>
    %cst_40 = arith.constant 1.000000e+00 : f32
    %180 = vector.broadcast %cst_40 : f32 to vector<2x128xf32>
    %181 = arith.subf %175, %180 : vector<2x128xf32>
    %cst_41 = arith.constant 0.0101010101 : f32
    %182 = vector.broadcast %cst_41 : f32 to vector<2x128xf32>
    %183 = arith.mulf %181, %182 : vector<2x128xf32>
    %184 = vector.broadcast %31 : f32 to vector<2x128xf32>
    %185 = arith.mulf %184, %119 : vector<2x128xf32>
    %186 = vector.broadcast %33 : f32 to vector<2x128xf32>
    %187 = arith.mulf %186, %120 : vector<2x128xf32>
    %188 = arith.addf %185, %187 : vector<2x128xf32>
    %189 = vector.broadcast %35 : f32 to vector<2x128xf32>
    %190 = arith.mulf %189, %121 : vector<2x128xf32>
    %191 = arith.addf %188, %190 : vector<2x128xf32>
    %192 = vector.broadcast %37 : f32 to vector<2x128xf32>
    %193 = arith.mulf %192, %119 : vector<2x128xf32>
    %194 = vector.broadcast %39 : f32 to vector<2x128xf32>
    %195 = arith.mulf %194, %120 : vector<2x128xf32>
    %196 = arith.addf %193, %195 : vector<2x128xf32>
    %197 = vector.broadcast %41 : f32 to vector<2x128xf32>
    %198 = arith.mulf %197, %121 : vector<2x128xf32>
    %199 = arith.addf %196, %198 : vector<2x128xf32>
    %200 = vector.broadcast %43 : f32 to vector<2x128xf32>
    %201 = arith.mulf %200, %119 : vector<2x128xf32>
    %202 = vector.broadcast %45 : f32 to vector<2x128xf32>
    %203 = arith.mulf %202, %120 : vector<2x128xf32>
    %204 = arith.addf %201, %203 : vector<2x128xf32>
    %205 = vector.broadcast %47 : f32 to vector<2x128xf32>
    %206 = arith.mulf %205, %121 : vector<2x128xf32>
    %207 = arith.addf %204, %206 : vector<2x128xf32>
    %cst_42 = arith.constant 9.900000e+01 : f32
    %208 = vector.broadcast %cst_42 : f32 to vector<2x128xf32>
    %209 = arith.mulf %208, %179 : vector<2x128xf32>
    %cst_43 = arith.constant 1.000000e+00 : f32
    %210 = vector.broadcast %cst_43 : f32 to vector<2x128xf32>
    %211 = arith.addf %210, %209 : vector<2x128xf32>
    %cst_44 = arith.constant 1.000000e+00 : f32
    %212 = vector.broadcast %cst_44 : f32 to vector<2x128xf32>
    %213 = arith.subf %175, %212 : vector<2x128xf32>
    %cst_45 = arith.constant 5.000000e-01 : f32
    %214 = vector.broadcast %cst_45 : f32 to vector<2x128xf32>
    %215 = arith.mulf %213, %214 : vector<2x128xf32>
    %216 = arith.addf %167, %215 : vector<2x128xf32>
    %217 = tpu.reciprocal %216 {approx = true} : vector<2x128xf32> -> vector<2x128xf32>
    %218 = arith.mulf %216, %217 : vector<2x128xf32>
    %cst_46 = arith.constant 2.000000e+00 : f32
    %219 = vector.broadcast %cst_46 : f32 to vector<2x128xf32>
    %220 = arith.subf %219, %218 : vector<2x128xf32>
    %221 = arith.mulf %217, %220 : vector<2x128xf32>
    %222 = vector.broadcast %19 : f32 to vector<2x128xf32>
    %223 = arith.mulf %222, %147 : vector<2x128xf32>
    %224 = vector.broadcast %21 : f32 to vector<2x128xf32>
    %225 = arith.mulf %224, %157 : vector<2x128xf32>
    %226 = arith.addf %223, %225 : vector<2x128xf32>
    %227 = vector.broadcast %23 : f32 to vector<2x128xf32>
    %228 = arith.mulf %227, %216 : vector<2x128xf32>
    %229 = arith.addf %226, %228 : vector<2x128xf32>
    %230 = arith.mulf %229, %221 : vector<2x128xf32>
    %231 = vector.broadcast %25 : f32 to vector<2x128xf32>
    %232 = arith.mulf %231, %147 : vector<2x128xf32>
    %233 = vector.broadcast %27 : f32 to vector<2x128xf32>
    %234 = arith.mulf %233, %157 : vector<2x128xf32>
    %235 = arith.addf %232, %234 : vector<2x128xf32>
    %236 = vector.broadcast %29 : f32 to vector<2x128xf32>
    %237 = arith.mulf %236, %216 : vector<2x128xf32>
    %238 = arith.addf %235, %237 : vector<2x128xf32>
    %239 = arith.mulf %238, %221 : vector<2x128xf32>
    %cst_47 = arith.constant 5.000000e-01 : f32
    %240 = vector.broadcast %cst_47 : f32 to vector<2x128xf32>
    %241 = arith.cmpf ogt, %58, %240 : vector<2x128xf32>
    %242 = arith.select %241, %97, %230 : vector<2x128xi1>, vector<2x128xf32>
    %243 = arith.select %241, %87, %239 : vector<2x128xi1>, vector<2x128xf32>
    %cst_48 = arith.constant 0.0666666701 : f32
    %244 = vector.broadcast %cst_48 : f32 to vector<2x128xf32>
    %245 = arith.mulf %242, %244 : vector<2x128xf32>
    %cst_49 = arith.constant 5.000000e-01 : f32
    %246 = vector.broadcast %cst_49 : f32 to vector<2x128xf32>
    %247 = arith.subf %245, %246 : vector<2x128xf32>
    %cst_50 = arith.constant 2.000000e+00 : f32
    %248 = vector.broadcast %cst_50 : f32 to vector<2x128xf32>
    %249 = arith.mulf %247, %248 : vector<2x128xf32>
    %c0_51 = arith.constant 0 : index
    %c0_52 = arith.constant 0 : index
    %c0_53 = arith.constant 0 : index
    %c0_54 = arith.constant 0 : index
    %250 = vector.load %arg8[%c0_51, %c0_52, %c0_53, %c0_54] : memref<1x2x2x128xf32, #tpu.memory_space<vmem>>, vector<1x1x2x128xf32>
    %251 = vector.shape_cast %250 : vector<1x1x2x128xf32> to vector<2x128xf32>
    %252 = vector.shape_cast %249 : vector<2x128xf32> to vector<1x1x2x128xf32>
    tpu.vector_store %arg8[%c0_51, %c0_52, %c0_53, %c0_54], %252 {strides = array<i32>} : memref<1x2x2x128xf32, #tpu.memory_space<vmem>>, vector<1x1x2x128xf32>,
    %cst_55 = arith.constant 0.0666666701 : f32
    %253 = vector.broadcast %cst_55 : f32 to vector<2x128xf32>
    %254 = arith.mulf %243, %253 : vector<2x128xf32>
    %cst_56 = arith.constant 5.000000e-01 : f32
    %255 = vector.broadcast %cst_56 : f32 to vector<2x128xf32>
    %256 = arith.subf %254, %255 : vector<2x128xf32>
    %cst_57 = arith.constant 2.000000e+00 : f32
    %257 = vector.broadcast %cst_57 : f32 to vector<2x128xf32>
    %258 = arith.mulf %256, %257 : vector<2x128xf32>
    %c0_58 = arith.constant 0 : index
    %c1_59 = arith.constant 1 : index
    %c0_60 = arith.constant 0 : index
    %c0_61 = arith.constant 0 : index
    %259 = vector.load %arg8[%c0_58, %c1_59, %c0_60, %c0_61] : memref<1x2x2x128xf32, #tpu.memory_space<vmem>>, vector<1x1x2x128xf32>
    %260 = vector.shape_cast %259 : vector<1x1x2x128xf32> to vector<2x128xf32>
    %261 = vector.shape_cast %258 : vector<2x128xf32> to vector<1x1x2x128xf32>
    tpu.vector_store %arg8[%c0_58, %c1_59, %c0_60, %c0_61], %261 {strides = array<i32>} : memref<1x2x2x128xf32, #tpu.memory_space<vmem>>, vector<1x1x2x128xf32>,
    %cst_62 = arith.constant 0x4B400000 : f32
    %262 = vector.broadcast %cst_62 : f32 to vector<2x128xf32>
    %263 = arith.addf %242, %262 : vector<2x128xf32>
    %cst_63 = arith.constant 0x4B400000 : f32
    %264 = vector.broadcast %cst_63 : f32 to vector<2x128xf32>
    %265 = arith.subf %263, %264 : vector<2x128xf32>
    %cst_64 = arith.constant 0x4B400000 : f32
    %266 = vector.broadcast %cst_64 : f32 to vector<2x128xf32>
    %267 = arith.addf %243, %266 : vector<2x128xf32>
    %cst_65 = arith.constant 0x4B400000 : f32
    %268 = vector.broadcast %cst_65 : f32 to vector<2x128xf32>
    %269 = arith.subf %267, %268 : vector<2x128xf32>
    %cst_66 = arith.constant 1.600000e+01 : f32
    %270 = vector.broadcast %cst_66 : f32 to vector<2x128xf32>
    %271 = arith.mulf %269, %270 : vector<2x128xf32>
    %272 = arith.addf %265, %271 : vector<2x128xf32>
    %273 = arith.fptosi %272 : vector<2x128xf32> to vector<2x128xi32>
    %c0_67 = arith.constant 0 : index
    %c0_68 = arith.constant 0 : index
    %c0_69 = arith.constant 0 : index
    %274 = vector.load %arg9[%c0_67, %c0_68, %c0_69] : memref<1x2x128xi32, #tpu.memory_space<vmem>>, vector<1x2x128xi32>
    %275 = vector.shape_cast %274 : vector<1x2x128xi32> to vector<2x128xi32>
    %276 = vector.shape_cast %273 : vector<2x128xi32> to vector<1x2x128xi32>
    tpu.vector_store %arg9[%c0_67, %c0_68, %c0_69], %276 {strides = array<i32>} : memref<1x2x128xi32, #tpu.memory_space<vmem>>, vector<1x2x128xi32>,
    %277 = arith.mulf %211, %191 : vector<2x128xf32>
    %278 = vector.broadcast %49 : f32 to vector<2x128xf32>
    %279 = arith.addf %277, %278 : vector<2x128xf32>
    %c0_70 = arith.constant 0 : index
    %c0_71 = arith.constant 0 : index
    %c0_72 = arith.constant 0 : index
    %c0_73 = arith.constant 0 : index
    %280 = vector.load %arg10[%c0_70, %c0_71, %c0_72, %c0_73] : memref<3x1x2x128xf32, #tpu.memory_space<vmem>>, vector<1x1x2x128xf32>
    %281 = vector.shape_cast %280 : vector<1x1x2x128xf32> to vector<2x128xf32>
    %282 = vector.shape_cast %279 : vector<2x128xf32> to vector<1x1x2x128xf32>
    tpu.vector_store %arg10[%c0_70, %c0_71, %c0_72, %c0_73], %282 {strides = array<i32>} : memref<3x1x2x128xf32, #tpu.memory_space<vmem>>, vector<1x1x2x128xf32>,
    %283 = arith.mulf %211, %199 : vector<2x128xf32>
    %284 = vector.broadcast %51 : f32 to vector<2x128xf32>
    %285 = arith.addf %283, %284 : vector<2x128xf32>
    %c1_74 = arith.constant 1 : index
    %c0_75 = arith.constant 0 : index
    %c0_76 = arith.constant 0 : index
    %c0_77 = arith.constant 0 : index
    %286 = vector.load %arg10[%c1_74, %c0_75, %c0_76, %c0_77] : memref<3x1x2x128xf32, #tpu.memory_space<vmem>>, vector<1x1x2x128xf32>
    %287 = vector.shape_cast %286 : vector<1x1x2x128xf32> to vector<2x128xf32>
    %288 = vector.shape_cast %285 : vector<2x128xf32> to vector<1x1x2x128xf32>
    tpu.vector_store %arg10[%c1_74, %c0_75, %c0_76, %c0_77], %288 {strides = array<i32>} : memref<3x1x2x128xf32, #tpu.memory_space<vmem>>, vector<1x1x2x128xf32>,
    %289 = arith.mulf %211, %207 : vector<2x128xf32>
    %290 = vector.broadcast %53 : f32 to vector<2x128xf32>
    %291 = arith.addf %289, %290 : vector<2x128xf32>
    %c2_78 = arith.constant 2 : index
    %c0_79 = arith.constant 0 : index
    %c0_80 = arith.constant 0 : index
    %c0_81 = arith.constant 0 : index
    %292 = vector.load %arg10[%c2_78, %c0_79, %c0_80, %c0_81] : memref<3x1x2x128xf32, #tpu.memory_space<vmem>>, vector<1x1x2x128xf32>
    %293 = vector.shape_cast %292 : vector<1x1x2x128xf32> to vector<2x128xf32>
    %294 = vector.shape_cast %291 : vector<2x128xf32> to vector<1x1x2x128xf32>
    tpu.vector_store %arg10[%c2_78, %c0_79, %c0_80, %c0_81], %294 {strides = array<i32>} : memref<3x1x2x128xf32, #tpu.memory_space<vmem>>, vector<1x1x2x128xf32>,
    %cst_82 = arith.constant 9.900000e+01 : f32
    %295 = vector.broadcast %cst_82 : f32 to vector<2x128xf32>
    %296 = arith.mulf %295, %183 : vector<2x128xf32>
    %cst_83 = arith.constant 1.000000e+00 : f32
    %297 = vector.broadcast %cst_83 : f32 to vector<2x128xf32>
    %298 = arith.addf %297, %296 : vector<2x128xf32>
    %c0_84 = arith.constant 0 : index
    %c0_85 = arith.constant 0 : index
    %c0_86 = arith.constant 0 : index
    %299 = vector.load %arg11[%c0_84, %c0_85, %c0_86] : memref<1x2x128xf32, #tpu.memory_space<vmem>>, vector<1x2x128xf32>
    %300 = vector.shape_cast %299 : vector<1x2x128xf32> to vector<2x128xf32>
    %301 = vector.shape_cast %298 : vector<2x128xf32> to vector<1x2x128xf32>
    tpu.vector_store %arg11[%c0_84, %c0_85, %c0_86], %301 {strides = array<i32>} : memref<1x2x128xf32, #tpu.memory_space<vmem>>, vector<1x2x128xf32>,
    %c0_87 = arith.constant 0 : index
    %c0_88 = arith.constant 0 : index
    %c0_89 = arith.constant 0 : index
    %c0_90 = arith.constant 0 : index
    %302 = vector.load %arg12[%c0_87, %c0_88, %c0_89, %c0_90] : memref<3x1x2x128xf32, #tpu.memory_space<vmem>>, vector<1x1x2x128xf32>
    %303 = vector.shape_cast %302 : vector<1x1x2x128xf32> to vector<2x128xf32>
    %304 = vector.shape_cast %119 : vector<2x128xf32> to vector<1x1x2x128xf32>
    tpu.vector_store %arg12[%c0_87, %c0_88, %c0_89, %c0_90], %304 {strides = array<i32>} : memref<3x1x2x128xf32, #tpu.memory_space<vmem>>, vector<1x1x2x128xf32>,
    %c1_91 = arith.constant 1 : index
    %c0_92 = arith.constant 0 : index
    %c0_93 = arith.constant 0 : index
    %c0_94 = arith.constant 0 : index
    %305 = vector.load %arg12[%c1_91, %c0_92, %c0_93, %c0_94] : memref<3x1x2x128xf32, #tpu.memory_space<vmem>>, vector<1x1x2x128xf32>
    %306 = vector.shape_cast %305 : vector<1x1x2x128xf32> to vector<2x128xf32>
    %307 = vector.shape_cast %120 : vector<2x128xf32> to vector<1x1x2x128xf32>
    tpu.vector_store %arg12[%c1_91, %c0_92, %c0_93, %c0_94], %307 {strides = array<i32>} : memref<3x1x2x128xf32, #tpu.memory_space<vmem>>, vector<1x1x2x128xf32>,
    %c2_95 = arith.constant 2 : index
    %c0_96 = arith.constant 0 : index
    %c0_97 = arith.constant 0 : index
    %c0_98 = arith.constant 0 : index
    %308 = vector.load %arg12[%c2_95, %c0_96, %c0_97, %c0_98] : memref<3x1x2x128xf32, #tpu.memory_space<vmem>>, vector<1x1x2x128xf32>
    %309 = vector.shape_cast %308 : vector<1x1x2x128xf32> to vector<2x128xf32>
    %310 = vector.shape_cast %121 : vector<2x128xf32> to vector<1x1x2x128xf32>
    tpu.vector_store %arg12[%c2_95, %c0_96, %c0_97, %c0_98], %310 {strides = array<i32>} : memref<3x1x2x128xf32, #tpu.memory_space<vmem>>, vector<1x1x2x128xf32>,
    return
  }
  func.func @transform_0(%arg0: i32, %arg1: i32) -> (i32, i32) {
    %c0_i32 = arith.constant 0 : i32
    %c0_i32_0 = arith.constant 0 : i32
    %c0_i32_1 = arith.constant 0 : i32
    return %c0_i32, %c0_i32_0 : i32, i32
  }
  func.func @transform_1(%arg0: i32, %arg1: i32) -> (i32, i32) {
    %c0_i32 = arith.constant 0 : i32
    %c0_i32_0 = arith.constant 0 : i32
    %c0_i32_1 = arith.constant 0 : i32
    return %c0_i32, %c0_i32_0 : i32, i32
  }
  func.func @transform_2(%arg0: i32, %arg1: i32) -> (i32, i32) {
    %c0_i32 = arith.constant 0 : i32
    %c0_i32_0 = arith.constant 0 : i32
    %c0_i32_1 = arith.constant 0 : i32
    return %c0_i32, %c0_i32_0 : i32, i32
  }
  func.func @transform_3(%arg0: i32, %arg1: i32) -> (i32, i32, i32) {
    %c0_i32 = arith.constant 0 : i32
    %c0_i32_0 = arith.constant 0 : i32
    return %arg1, %arg0, %c0_i32 : i32, i32, i32
  }
  func.func @transform_4(%arg0: i32, %arg1: i32) -> (i32, i32, i32) {
    %c0_i32 = arith.constant 0 : i32
    %c0_i32_0 = arith.constant 0 : i32
    return %arg1, %arg0, %c0_i32 : i32, i32, i32
  }
  func.func @transform_5(%arg0: i32, %arg1: i32) -> (i32, i32) {
    %c0_i32 = arith.constant 0 : i32
    %c0_i32_0 = arith.constant 0 : i32
    return %arg0, %c0_i32 : i32, i32
  }
  func.func @transform_6(%arg0: i32, %arg1: i32) -> (i32, i32, i32, i32) {
    %c0_i32 = arith.constant 0 : i32
    %c0_i32_0 = arith.constant 0 : i32
    %c0_i32_1 = arith.constant 0 : i32
    return %arg1, %c0_i32, %arg0, %c0_i32_0 : i32, i32, i32, i32
  }
  func.func @transform_7(%arg0: i32, %arg1: i32) -> (i32, i32, i32) {
    %c0_i32 = arith.constant 0 : i32
    %c0_i32_0 = arith.constant 0 : i32
    return %arg1, %arg0, %c0_i32 : i32, i32, i32
  }
  func.func @transform_8(%arg0: i32, %arg1: i32) -> (i32, i32, i32, i32) {
    %c0_i32 = arith.constant 0 : i32
    %c0_i32_0 = arith.constant 0 : i32
    %c0_i32_1 = arith.constant 0 : i32
    return %c0_i32, %arg1, %arg0, %c0_i32_0 : i32, i32, i32, i32
  }
  func.func @transform_9(%arg0: i32, %arg1: i32) -> (i32, i32, i32) {
    %c0_i32 = arith.constant 0 : i32
    %c0_i32_0 = arith.constant 0 : i32
    return %arg1, %arg0, %c0_i32 : i32, i32, i32
  }
  func.func @transform_10(%arg0: i32, %arg1: i32) -> (i32, i32, i32, i32) {
    %c0_i32 = arith.constant 0 : i32
    %c0_i32_0 = arith.constant 0 : i32
    %c0_i32_1 = arith.constant 0 : i32
    return %c0_i32, %arg1, %arg0, %c0_i32_0 : i32, i32, i32, i32
  }
}

</mosaic_0001>

<llo_original>
// kernel: omni_dibr_forward.1
$region0: #{omni_dibr_forward.1}
  #allocation0 [shape = 'u32[]', space=smem, size = 0x4, offset = 0x4, fixed_abs, tag = 'smem constant byte address 0x4 - core index']
  #allocation1 [shape = 'u32[72,128]{1,0:T(1,128)}', space=vmem, size = 0x9000, scoped, tag = 'internal scratch']
  %s0 = inlined_call_operand.vmem [shape: f32[8,9], index: 0, kind: input, shape index: {}]
  %s1 = inlined_call_operand.vmem [shape: f32[8,9], index: 1, kind: input, shape index: {}]
  %s2 = inlined_call_operand.vmem [shape: f32[8,12], index: 2, kind: input, shape index: {}]
  %s3 = inlined_call_operand.vmem [shape: f32[8,2,128], index: 3, kind: input, shape index: {}]
  %s4 = inlined_call_operand.vmem [shape: f32[8,2,128], index: 4, kind: input, shape index: {}]
  %s5 = inlined_call_operand.vmem [shape: f32[2,128], index: 5, kind: input, shape index: {}]
  %s6 = inlined_call_operand.vmem [shape: f32[8,2,2,128], index: 6, kind: output, shape index: {0}]
  %s7 = inlined_call_operand.vmem [shape: s32[8,2,128], index: 7, kind: output, shape index: {1}]
  %s8 = inlined_call_operand.vmem [shape: f32[3,8,2,128], index: 8, kind: output, shape index: {2}]
  %s9 = inlined_call_operand.vmem [shape: f32[8,2,128], index: 9, kind: output, shape index: {3}]
  %s10 = inlined_call_operand.vmem [shape: f32[3,8,2,128], index: 10, kind: output, shape index: {4}]
  %11 = xla_tuple %s6, %s7, %s8, %s9, %s10
  %s12 = sld [smem:[#allocation0]]
  $region161: #{omni_dibr_forward.1} parent=0
    _
  %s14 = ssub.s32 1, %s12
  %s15 = scalar_select 0, %s14, %s12
  $region1: #{omni_dibr_forward.1} parent=0
    #allocation2 [shape = 'u8[4096]{0}', space=smem, size = 0x1000, scoped, tag = 'input window, operand 0, single buffered']
    #allocation3 [shape = 's32[2]{0}', space=sflag, size = 0x8, scoped, tag = 'scoped memory for omni_dibr_forward.1']
    #allocation4 [shape = 'u8[4096]{0}', space=smem, size = 0x1000, scoped, tag = 'input window, operand 1, single buffered']
    #allocation5 [shape = 's32[1]{0}', space=sflag, size = 0x4, scoped, tag = 'scoped memory for omni_dibr_forward.1']
    #allocation6 [shape = 'u8[4096]{0}', space=smem, size = 0x1000, scoped, tag = 'input window, operand 2, single buffered']
    #allocation7 [shape = 'u8[6144]{0}', space=vmem, size = 0x1800, scoped, tag = 'output window, operand 2']
    #allocation8 [shape = 'u8[6144]{0}', space=vmem, size = 0x1800, scoped, tag = 'output window, operand 4']
    %16 = vsyncpa [#allocation3], 0
    %17 = vsyncpa [#allocation5], 0
    loop: start=0, step=1, limit=10
    $region2: #{omni_dibr_forward.1} parent=1 // loop_pre_header
      _
    $region3: #{omni_dibr_forward.1} parent=1 // loop_header
      %s19 = sphi 0, %s23
      %p20 = scmp.ge.s32.totalorder %s19, 10
      %s26 = sphi 0, %s38
      %s27 = sphi 0, %s34
      %s28 = sphi 0, %s26
      %s29 = sphi 0, %s27
      %s30 = sphi 0, %s28
      %s31 = sphi 0, %s29
      %s39 = sphi 0, %s39
      %s41 = sphi 0, %s39
      %s42 = sphi 0, %s41
      %s56 = sphi 0, %s42
      %s60 = sphi 0, %s60
      %s62 = sphi 0, %s60
      %s63 = sphi 0, %s62
      %s77 = sphi 0, %s63
      %s81 = sphi 0, %s81
      %s83 = sphi 0, %s81
      %s84 = sphi 0, %s83
      %s98 = sphi 0, %s84
      %s106 = sphi 0, %s108
      %s109 = sphi 0, %s106
      %s110 = sphi 0, %s109
      %s126 = sphi 0, %s110
      %s134 = sphi 0, %s136
      %s137 = sphi 0, %s134
      %s138 = sphi 0, %s137
      %s154 = sphi 0, %s138
      %s160 = sphi 0, %s162
      %s163 = sphi 0, %s160
      %s164 = sphi 0, %s163
      %s180 = sphi 0, %s164
      %s188 = sphi 0, %s190
      %s191 = sphi 0, %s188
      %s192 = sphi 0, %s191
      %s208 = sphi 0, %s192
      %s216 = sphi 0, %s218
      %s219 = sphi 0, %s216
      %s220 = sphi 0, %s219
      %s236 = sphi 0, %s220
      %s244 = sphi 0, %s246
      %s247 = sphi 0, %s244
      %s248 = sphi 0, %s247
      %s264 = sphi 0, %s248
      %s272 = sphi 0, %s274
      %s275 = sphi 0, %s272
      %s276 = sphi 0, %s275
      %s292 = sphi 0, %s276
      %s300 = sphi 0, %s302
      %s303 = sphi 0, %s300
      %s304 = sphi 0, %s303
      %s320 = sphi 0, %s304
    $region4: #{omni_dibr_forward.1} parent=1 // loop_header_branch
      %22 = sbr.rel (%p20) target = $region8
    $region5: #{omni_dibr_forward.1} parent=1 // loop_body
      %s24 = ssub.s32 %s19, 1
      %s25 = ssub.s32 %s19, 2
      %s32 = sadd.s32 1, %s27
      %p33 = scmp.ge.s32.totalorder %s32, 8
      %s34 = scalar_select %p33, 0, %s32
      %s35 = sadd.s32 1, %s26
      %s36 = scalar_select %p33, %s35, %s26
      %p37 = scmp.ge.s32.totalorder %s36, 1
      %s38 = scalar_select %p37, 0, %s36
      %s40 = sadd.s32 %s39, 1
      %p43 = scmp.eq.s32.totalorder %s19, 7
      %p44 = scmp.ne.s32.totalorder %s39, %s41
      %p45 = scmp.eq.s32.totalorder %s19, 0
      %p46 = por %p44, %p45
      %p47 = scmp.ne.s32.totalorder %s39, %s41
      %p48 = scmp.eq.s32.totalorder %s24, 7
      %p49 = por %p47, %p48
      %p50 = scmp.ne.s32.totalorder %s41, %s42
      %p51 = scmp.eq.s32.totalorder %s24, 0
      %p52 = por %p50, %p51
      %p53 = scmp.ne.s32.totalorder %s41, %s42
      %p54 = scmp.eq.s32.totalorder %s25, 7
      %p55 = por %p53, %p54
      %p57 = scmp.ne.s32.totalorder %s42, %s56
      %p58 = scmp.eq.s32.totalorder %s25, 0
      %p59 = por %p57, %p58
      %s61 = sadd.s32 %s60, 1
      %p64 = scmp.eq.s32.totalorder %s19, 7
      %p65 = scmp.ne.s32.totalorder %s60, %s62
      %p66 = scmp.eq.s32.totalorder %s19, 0
      %p67 = por %p65, %p66
      %p68 = scmp.ne.s32.totalorder %s60, %s62
      %p69 = scmp.eq.s32.totalorder %s24, 7
      %p70 = por %p68, %p69
      %p71 = scmp.ne.s32.totalorder %s62, %s63
      %p72 = scmp.eq.s32.totalorder %s24, 0
      %p73 = por %p71, %p72
      %p74 = scmp.ne.s32.totalorder %s62, %s63
      %p75 = scmp.eq.s32.totalorder %s25, 7
      %p76 = por %p74, %p75
      %p78 = scmp.ne.s32.totalorder %s63, %s77
      %p79 = scmp.eq.s32.totalorder %s25, 0
      %p80 = por %p78, %p79
      %s82 = sadd.s32 %s81, 1
      %p85 = scmp.eq.s32.totalorder %s19, 7
      %p86 = scmp.ne.s32.totalorder %s81, %s83
      %p87 = scmp.eq.s32.totalorder %s19, 0
      %p88 = por %p86, %p87
      %p89 = scmp.ne.s32.totalorder %s81, %s83
      %p90 = scmp.eq.s32.totalorder %s24, 7
      %p91 = por %p89, %p90
      %p92 = scmp.ne.s32.totalorder %s83, %s84
      %p93 = scmp.eq.s32.totalorder %s24, 0
      %p94 = por %p92, %p93
      %p95 = scmp.ne.s32.totalorder %s83, %s84
      %p96 = scmp.eq.s32.totalorder %s25, 7
      %p97 = por %p95, %p96
      %p99 = scmp.ne.s32.totalorder %s84, %s98
      %p100 = scmp.eq.s32.totalorder %s25, 0
      %p101 = por %p99, %p100
      %s102 = ssub.s32 %s27, %s34
      %s103 = ssub.s32 %s26, %s38
      %s104 = sor.u32 %s102, %s103
      %p105 = scmp.eq.s32.totalorder %s104, 0
      %s107 = sadd.s32 %s106, 1
      %s108 = scalar_select %p105, %s106, %s107
      %p111 = pneg %p105
      %p112 = scmp.eq.s32.totalorder %s19, 7
      %p113 = por %p111, %p112
      %p114 = scmp.ne.s32.totalorder %s106, %s109
      %p115 = scmp.eq.s32.totalorder %s19, 0
      %p116 = por %p114, %p115
      %p117 = scmp.ne.s32.totalorder %s106, %s109
      %p118 = scmp.eq.s32.totalorder %s24, 7
      %p119 = por %p117, %p118
      %p120 = scmp.ne.s32.totalorder %s109, %s110
      %p121 = scmp.eq.s32.totalorder %s24, 0
      %p122 = por %p120, %p121
      %p123 = scmp.ne.s32.totalorder %s109, %s110
      %p124 = scmp.eq.s32.totalorder %s25, 7
      %p125 = por %p123, %p124
      %p127 = scmp.ne.s32.totalorder %s110, %s126
      %p128 = scmp.eq.s32.totalorder %s25, 0
      %p129 = por %p127, %p128
      %s130 = ssub.s32 %s27, %s34
      %s131 = ssub.s32 %s26, %s38
      %s132 = sor.u32 %s130, %s131
      %p133 = scmp.eq.s32.totalorder %s132, 0
      %s135 = sadd.s32 %s134, 1
      %s136 = scalar_select %p133, %s134, %s135
      %p139 = pneg %p133
      %p140 = scmp.eq.s32.totalorder %s19, 7
      %p141 = por %p139, %p140
      %p142 = scmp.ne.s32.totalorder %s134, %s137
      %p143 = scmp.eq.s32.totalorder %s19, 0
      %p144 = por %p142, %p143
      %p145 = scmp.ne.s32.totalorder %s134, %s137
      %p146 = scmp.eq.s32.totalorder %s24, 7
      %p147 = por %p145, %p146
      %p148 = scmp.ne.s32.totalorder %s137, %s138
      %p149 = scmp.eq.s32.totalorder %s24, 0
      %p150 = por %p148, %p149
      %p151 = scmp.ne.s32.totalorder %s137, %s138
      %p152 = scmp.eq.s32.totalorder %s25, 7
      %p153 = por %p151, %p152
      %p155 = scmp.ne.s32.totalorder %s138, %s154
      %p156 = scmp.eq.s32.totalorder %s25, 0
      %p157 = por %p155, %p156
      %s158 = ssub.s32 %s26, %s38
      %p159 = scmp.eq.s32.totalorder %s158, 0
      %s161 = sadd.s32 %s160, 1
      %s162 = scalar_select %p159, %s160, %s161
      %p165 = pneg %p159
      %p166 = scmp.eq.s32.totalorder %s19, 7
      %p167 = por %p165, %p166
      %p168 = scmp.ne.s32.totalorder %s160, %s163
      %p169 = scmp.eq.s32.totalorder %s19, 0
      %p170 = por %p168, %p169
      %p171 = scmp.ne.s32.totalorder %s160, %s163
      %p172 = scmp.eq.s32.totalorder %s24, 7
      %p173 = por %p171, %p172
      %p174 = scmp.ne.s32.totalorder %s163, %s164
      %p175 = scmp.eq.s32.totalorder %s24, 0
      %p176 = por %p174, %p175
      %p177 = scmp.ne.s32.totalorder %s163, %s164
      %p178 = scmp.eq.s32.totalorder %s25, 7
      %p179 = por %p177, %p178
      %p181 = scmp.ne.s32.totalorder %s164, %s180
      %p182 = scmp.eq.s32.totalorder %s25, 0
      %p183 = por %p181, %p182
      %s184 = ssub.s32 %s27, %s34
      %s185 = ssub.s32 %s26, %s38
      %s186 = sor.u32 %s184, %s185
      %p187 = scmp.eq.s32.totalorder %s186, 0
      %s189 = sadd.s32 %s188, 1
      %s190 = scalar_select %p187, %s188, %s189
      %p193 = pneg %p187
      %p194 = scmp.eq.s32.totalorder %s19, 7
      %p195 = por %p193, %p194
      %p196 = scmp.ne.s32.totalorder %s188, %s191
      %p197 = scmp.eq.s32.totalorder %s19, 0
      %p198 = por %p196, %p197
      %p199 = scmp.ne.s32.totalorder %s188, %s191
      %p200 = scmp.eq.s32.totalorder %s24, 7
      %p201 = por %p199, %p200
      %p202 = scmp.ne.s32.totalorder %s191, %s192
      %p203 = scmp.eq.s32.totalorder %s24, 0
      %p204 = por %p202, %p203
      %p205 = scmp.ne.s32.totalorder %s191, %s192
      %p206 = scmp.eq.s32.totalorder %s25, 7
      %p207 = por %p205, %p206
      %p209 = scmp.ne.s32.totalorder %s192, %s208
      %p210 = scmp.eq.s32.totalorder %s25, 0
      %p211 = por %p209, %p210
      %s212 = ssub.s32 %s27, %s34
      %s213 = ssub.s32 %s26, %s38
      %s214 = sor.u32 %s212, %s213
      %p215 = scmp.eq.s32.totalorder %s214, 0
      %s217 = sadd.s32 %s216, 1
      %s218 = scalar_select %p215, %s216, %s217
      %p221 = pneg %p215
      %p222 = scmp.eq.s32.totalorder %s19, 7
      %p223 = por %p221, %p222
      %p224 = scmp.ne.s32.totalorder %s216, %s219
      %p225 = scmp.eq.s32.totalorder %s19, 0
      %p226 = por %p224, %p225
      %p227 = scmp.ne.s32.totalorder %s216, %s219
      %p228 = scmp.eq.s32.totalorder %s24, 7
      %p229 = por %p227, %p228
      %p230 = scmp.ne.s32.totalorder %s219, %s220
      %p231 = scmp.eq.s32.totalorder %s24, 0
      %p232 = por %p230, %p231
      %p233 = scmp.ne.s32.totalorder %s219, %s220
      %p234 = scmp.eq.s32.totalorder %s25, 7
      %p235 = por %p233, %p234
      %p237 = scmp.ne.s32.totalorder %s220, %s236
      %p238 = scmp.eq.s32.totalorder %s25, 0
      %p239 = por %p237, %p238
      %s240 = ssub.s32 %s27, %s34
      %s241 = ssub.s32 %s26, %s38
      %s242 = sor.u32 %s240, %s241
      %p243 = scmp.eq.s32.totalorder %s242, 0
      %s245 = sadd.s32 %s244, 1
      %s246 = scalar_select %p243, %s244, %s245
      %p249 = pneg %p243
      %p250 = scmp.eq.s32.totalorder %s19, 7
      %p251 = por %p249, %p250
      %p252 = scmp.ne.s32.totalorder %s244, %s247
      %p253 = scmp.eq.s32.totalorder %s19, 0
      %p254 = por %p252, %p253
      %p255 = scmp.ne.s32.totalorder %s244, %s247
      %p256 = scmp.eq.s32.totalorder %s24, 7
      %p257 = por %p255, %p256
      %p258 = scmp.ne.s32.totalorder %s247, %s248
      %p259 = scmp.eq.s32.totalorder %s24, 0
      %p260 = por %p258, %p259
      %p261 = scmp.ne.s32.totalorder %s247, %s248
      %p262 = scmp.eq.s32.totalorder %s25, 7
      %p263 = por %p261, %p262
      %p265 = scmp.ne.s32.totalorder %s248, %s264
      %p266 = scmp.eq.s32.totalorder %s25, 0
      %p267 = por %p265, %p266
      %s268 = ssub.s32 %s27, %s34
      %s269 = ssub.s32 %s26, %s38
      %s270 = sor.u32 %s268, %s269
      %p271 = scmp.eq.s32.totalorder %s270, 0
      %s273 = sadd.s32 %s272, 1
      %s274 = scalar_select %p271, %s272, %s273
      %p277 = pneg %p271
      %p278 = scmp.eq.s32.totalorder %s19, 7
      %p279 = por %p277, %p278
      %p280 = scmp.ne.s32.totalorder %s272, %s275
      %p281 = scmp.eq.s32.totalorder %s19, 0
      %p282 = por %p280, %p281
      %p283 = scmp.ne.s32.totalorder %s272, %s275
      %p284 = scmp.eq.s32.totalorder %s24, 7
      %p285 = por %p283, %p284
      %p286 = scmp.ne.s32.totalorder %s275, %s276
      %p287 = scmp.eq.s32.totalorder %s24, 0
      %p288 = por %p286, %p287
      %p289 = scmp.ne.s32.totalorder %s275, %s276
      %p290 = scmp.eq.s32.totalorder %s25, 7
      %p291 = por %p289, %p290
      %p293 = scmp.ne.s32.totalorder %s276, %s292
      %p294 = scmp.eq.s32.totalorder %s25, 0
      %p295 = por %p293, %p294
      %s296 = ssub.s32 %s27, %s34
      %s297 = ssub.s32 %s26, %s38
      %s298 = sor.u32 %s296, %s297
      %p299 = scmp.eq.s32.totalorder %s298, 0
      %s301 = sadd.s32 %s300, 1
      %s302 = scalar_select %p299, %s300, %s301
      %p305 = pneg %p299
      %p306 = scmp.eq.s32.totalorder %s19, 7
      %p307 = por %p305, %p306
      %p308 = scmp.ne.s32.totalorder %s300, %s303
      %p309 = scmp.eq.s32.totalorder %s19, 0
      %p310 = por %p308, %p309
      %p311 = scmp.ne.s32.totalorder %s300, %s303
      %p312 = scmp.eq.s32.totalorder %s24, 7
      %p313 = por %p311, %p312
      %p314 = scmp.ne.s32.totalorder %s303, %s304
      %p315 = scmp.eq.s32.totalorder %s24, 0
      %p316 = por %p314, %p315
      %p317 = scmp.ne.s32.totalorder %s303, %s304
      %p318 = scmp.eq.s32.totalorder %s25, 7
      %p319 = por %p317, %p318
      %p321 = scmp.ne.s32.totalorder %s304, %s320
      %p322 = scmp.eq.s32.totalorder %s25, 0
      %p323 = por %p321, %p322
      %p324 = scmp.le.s32.totalorder 1, %s19
      %p325 = scmp.lt.s32.totalorder %s19, 9
      %p326 = pnand %p324, %p325
      %p327 = pneg %p326
      // Predicated region
      $region9: #{omni_dibr_forward.1} parent=5 // pred_check
        _
      $region10: #{omni_dibr_forward.1} parent=5 // pred_check_branch
        %329 = sbr.rel (%p326) target = $region12
      $region11: #{omni_dibr_forward.1} parent=5 // pred_region
        %s330 = ssub.s32 %s19, 1
        // Predicated region
        $region13: #{omni_dibr_forward.1} parent=11 // pred_check
          %p331 = pneg %p52
        $region14: #{omni_dibr_forward.1} parent=11 // pred_check_branch
          %333 = sbr.rel (%p331) target = $region16
        $region15: #{omni_dibr_forward.1} parent=11 // pred_region
          %335 = vsyncadd [#allocation3], 0
          %s337 = sshll.u32 %s0, 4
          %s338 = int_to_ptr.vmem [resolvable:$true] %s337
          %340 = dma.vmem_to_smem %s338, 128, [#allocation2], [#allocation3]
        $region16: #{omni_dibr_forward.1} parent=11 // pred_fallthru
          _
        // Predicated region
        $region17: #{omni_dibr_forward.1} parent=11 // pred_check
          %p341 = pneg %p73
        $region18: #{omni_dibr_forward.1} parent=11 // pred_check_branch
          %343 = sbr.rel (%p341) target = $region20
        $region19: #{omni_dibr_forward.1} parent=11 // pred_region
          %345 = vsyncadd [#allocation5], 0
          %s347 = sshll.u32 %s1, 4
          %s348 = int_to_ptr.vmem [resolvable:$true] %s347
          %350 = dma.vmem_to_smem %s348, 128, [#allocation4], [#allocation5]
        $region20: #{omni_dibr_forward.1} parent=11 // pred_fallthru
          _
        // Predicated region
        $region21: #{omni_dibr_forward.1} parent=11 // pred_check
          %p351 = pneg %p94
        $region22: #{omni_dibr_forward.1} parent=11 // pred_check_branch
          %353 = sbr.rel (%p351) target = $region24
        $region23: #{omni_dibr_forward.1} parent=11 // pred_region
          %355 = vsyncadd [#allocation5], 0
          %s357 = sshll.u32 %s2, 4
          %s358 = int_to_ptr.vmem [resolvable:$true] %s357
          %360 = dma.vmem_to_smem %s358, 128, [#allocation6], [#allocation5]
        $region24: #{omni_dibr_forward.1} parent=11 // pred_fallthru
          _
        // Predicated region
        $region25: #{omni_dibr_forward.1} parent=11 // pred_check
          %p361 = pneg %p176
        $region26: #{omni_dibr_forward.1} parent=11 // pred_check_branch
          %363 = sbr.rel (%p361) target = $region28
        $region27: #{omni_dibr_forward.1} parent=11 // pred_region
          %p364 = scmp.lt.s32.totalorder %s28, 0
          %s365 = scalar_select %p364, %s28, 0
          %s366 = smul.addr %s365, 2
          %s367 = scalar_lea.vmem %s5, %s366
        $region28: #{omni_dibr_forward.1} parent=11 // pred_fallthru
          _
      $region12: #{omni_dibr_forward.1} parent=5 // pred_fallthru
        _
      %p368 = scmp.lt.s32.totalorder %s19, 8
      // Predicated region
      $region29: #{omni_dibr_forward.1} parent=5 // pred_check
        %p369 = pneg %p368
      $region30: #{omni_dibr_forward.1} parent=5 // pred_check_branch
        %371 = sbr.rel (%p369) target = $region32
      $region31: #{omni_dibr_forward.1} parent=5 // pred_region
        // Predicated region
        $region33: #{omni_dibr_forward.1} parent=31 // pred_check
          %p372 = pneg %p116
        $region34: #{omni_dibr_forward.1} parent=31 // pred_check_branch
          %374 = sbr.rel (%p372) target = $region36
        $region35: #{omni_dibr_forward.1} parent=31 // pred_region
          %p375 = scmp.lt.s32.totalorder %s27, 7
          %s376 = scalar_select %p375, %s27, 7
          %p377 = scmp.lt.s32.totalorder %s26, 0
          %s378 = scalar_select %p377, %s26, 0
          %s379 = sadd.s32 %s378, %s376
          %s380 = smul.addr %s379, 2
          %s381 = scalar_lea.vmem %s3, %s380
        $region36: #{omni_dibr_forward.1} parent=31 // pred_fallthru
          _
        // Predicated region
        $region37: #{omni_dibr_forward.1} parent=31 // pred_check
          %p382 = pneg %p144
        $region38: #{omni_dibr_forward.1} parent=31 // pred_check_branch
          %384 = sbr.rel (%p382) target = $region40
        $region39: #{omni_dibr_forward.1} parent=31 // pred_region
          %p385 = scmp.lt.s32.totalorder %s27, 7
          %s386 = scalar_select %p385, %s27, 7
          %p387 = scmp.lt.s32.totalorder %s26, 0
          %s388 = scalar_select %p387, %s26, 0
          %s389 = sadd.s32 %s388, %s386
          %s390 = smul.addr %s389, 2
          %s391 = scalar_lea.vmem %s4, %s390
        $region40: #{omni_dibr_forward.1} parent=31 // pred_fallthru
          _
      $region32: #{omni_dibr_forward.1} parent=5 // pred_fallthru
        _
      %p392 = scmp.le.s32.totalorder 1, %s19
      %p393 = scmp.lt.s32.totalorder %s19, 9
      %p394 = pnand %p392, %p393
      %p395 = pneg %p394
      // Predicated region
      $region41: #{omni_dibr_forward.1} parent=5 // pred_check
        _
      $region42: #{omni_dibr_forward.1} parent=5 // pred_check_branch
        %397 = sbr.rel (%p394) target = $region44
      $region43: #{omni_dibr_forward.1} parent=5 // pred_region
        %s398 = ssub.s32 %s19, 1
        // Predicated region
        $region45: #{omni_dibr_forward.1} parent=43 // pred_check
          %p399 = pneg %p52
        $region46: #{omni_dibr_forward.1} parent=43 // pred_check_branch
          %401 = sbr.rel (%p399) target = $region48
        $region47: #{omni_dibr_forward.1} parent=43 // pred_region
          %403 = dma.done [#allocation3], 128
        $region48: #{omni_dibr_forward.1} parent=43 // pred_fallthru
          _
        // Predicated region
        $region49: #{omni_dibr_forward.1} parent=43 // pred_check
          %p404 = pneg %p73
        $region50: #{omni_dibr_forward.1} parent=43 // pred_check_branch
          %406 = sbr.rel (%p404) target = $region52
        $region51: #{omni_dibr_forward.1} parent=43 // pred_region
          %408 = dma.done [#allocation5], 128
        $region52: #{omni_dibr_forward.1} parent=43 // pred_fallthru
          _
        // Predicated region
        $region53: #{omni_dibr_forward.1} parent=43 // pred_check
          %p409 = pneg %p94
        $region54: #{omni_dibr_forward.1} parent=43 // pred_check_branch
          %411 = sbr.rel (%p409) target = $region56
        $region55: #{omni_dibr_forward.1} parent=43 // pred_region
          %413 = dma.done [#allocation5], 128
        $region56: #{omni_dibr_forward.1} parent=43 // pred_fallthru
          _
        %414 = sfence
        %p415 = pneg %p52
        %p416 = pneg %p49
        %p417 = pneg %p73
        %p418 = pneg %p70
        %p419 = pneg %p94
        %p420 = pneg %p91
        %p421 = scmp.lt.s32.totalorder %s29, 7
        %s422 = scalar_select %p421, %s29, 7
        %p423 = scmp.lt.s32.totalorder %s28, 0
        %s424 = scalar_select %p423, %s28, 0
        %s425 = sadd.s32 %s424, %s422
        %s426 = smul.addr %s425, 2
        %s427 = scalar_lea.vmem %s3, %s426
        %p428 = pneg %p122
        %p429 = pneg %p119
        %p430 = scmp.lt.s32.totalorder %s29, 7
        %s431 = scalar_select %p430, %s29, 7
        %p432 = scmp.lt.s32.totalorder %s28, 0
        %s433 = scalar_select %p432, %s28, 0
        %s434 = sadd.s32 %s433, %s431
        %s435 = smul.addr %s434, 2
        %s436 = scalar_lea.vmem %s4, %s435
        %p437 = pneg %p150
        %p438 = pneg %p147
        %p439 = scmp.lt.s32.totalorder %s28, 0
        %s440 = scalar_select %p439, %s28, 0
        %s441 = smul.addr %s440, 2
        %s442 = scalar_lea.vmem %s5, %s441
        %p443 = pneg %p176
        %p444 = pneg %p173
        %p445 = pneg %p204
        %p446 = pneg %p201
        %p447 = scmp.lt.s32.totalorder %s29, 7
        %s448 = scalar_select %p447, %s29, 7
        %p449 = scmp.lt.s32.totalorder %s28, 0
        %s450 = scalar_select %p449, %s28, 0
        %s451 = smul.addr %s448, 2
        %s452 = sadd.s32 %s450, %s451
        %s453 = smul.addr %s452, 2
        %s454 = scalar_lea.vmem %s6, %s453
        %p455 = pneg %p232
        %p456 = pneg %p229
        %p457 = scmp.lt.s32.totalorder %s29, 7
        %s458 = scalar_select %p457, %s29, 7
        %p459 = scmp.lt.s32.totalorder %s28, 0
        %s460 = scalar_select %p459, %s28, 0
        %s461 = sadd.s32 %s460, %s458
        %s462 = smul.addr %s461, 2
        %s463 = scalar_lea.vmem %s7, %s462
        %p464 = pneg %p260
        %p465 = pneg %p257
        %s466 = sand.u32 %s247, 1
        %s467 = sand.u32 %s247, 1
        %s468 = smul.addr %s467, 6
        %s469 = scalar_lea.vmem [#allocation7], %s468
        %p470 = pneg %p288
        %p471 = pneg %p285
        %p472 = scmp.lt.s32.totalorder %s29, 7
        %s473 = scalar_select %p472, %s29, 7
        %p474 = scmp.lt.s32.totalorder %s28, 0
        %s475 = scalar_select %p474, %s28, 0
        %s476 = sadd.s32 %s475, %s473
        %s477 = smul.addr %s476, 2
        %s478 = scalar_lea.vmem %s9, %s477
        %p479 = pneg %p316
        %p480 = pneg %p313
        %s481 = sand.u32 %s303, 1
        %s482 = sand.u32 %s303, 1
        %s483 = smul.addr %s482, 6
        %s484 = scalar_lea.vmem [#allocation8], %s483
        %p485 = scmp.lt.s32.totalorder %s29, 7
        %s486 = scalar_select %p485, %s29, 7
        %p487 = scmp.lt.s32.totalorder %s28, 0
        %s488 = scalar_select %p487, %s28, 0
        %s489 = sadd.s32 %s488, %s486
        %s490 = smul.addr %s489, 2
        %s491 = scalar_lea.vmem %s3, %s490
        %p492 = scmp.lt.s32.totalorder %s29, 7
        %s493 = scalar_select %p492, %s29, 7
        %p494 = scmp.lt.s32.totalorder %s28, 0
        %s495 = scalar_select %p494, %s28, 0
        %s496 = sadd.s32 %s495, %s493
        %s497 = smul.addr %s496, 2
        %s498 = scalar_lea.vmem %s4, %s497
        %p499 = scmp.lt.s32.totalorder %s28, 0
        %s500 = scalar_select %p499, %s28, 0
        %s501 = smul.addr %s500, 2
        %s502 = scalar_lea.vmem %s5, %s501
        %p503 = scmp.lt.s32.totalorder %s29, 7
        %s504 = scalar_select %p503, %s29, 7
        %p505 = scmp.lt.s32.totalorder %s28, 0
        %s506 = scalar_select %p505, %s28, 0
        %s507 = smul.addr %s504, 2
        %s508 = sadd.s32 %s506, %s507
        %s509 = smul.addr %s508, 2
        %s510 = scalar_lea.vmem %s6, %s509
        %p511 = scmp.lt.s32.totalorder %s29, 7
        %s512 = scalar_select %p511, %s29, 7
        %p513 = scmp.lt.s32.totalorder %s28, 0
        %s514 = scalar_select %p513, %s28, 0
        %s515 = sadd.s32 %s514, %s512
        %s516 = smul.addr %s515, 2
        %s517 = scalar_lea.vmem %s7, %s516
        %p518 = scmp.lt.s32.totalorder %s29, 7
        %s519 = scalar_select %p518, %s29, 7
        %p520 = scmp.lt.s32.totalorder %s28, 0
        %s521 = scalar_select %p520, %s28, 0
        %s522 = sadd.s32 %s521, %s519
        %s523 = smul.addr %s522, 2
        %s524 = scalar_lea.vmem %s9, %s523
        %s525 = smul.u32 %s29, 128
        %s526 = sld [smem:[#allocation2 + %s525]]
        %s527 = sadd.s32 %s525, 1
        %s528 = sld [smem:[#allocation2 + %s527]]
        %s529 = sadd.s32 %s525, 2
        %s530 = sld [smem:[#allocation2 + %s529]]
        %s531 = sadd.s32 %s525, 3
        %s532 = sld [smem:[#allocation2 + %s531]]
        %s533 = sadd.s32 %s525, 4
        %s534 = sld [smem:[#allocation2 + %s533]]
        %s535 = sadd.s32 %s525, 5
        %s536 = sld [smem:[#allocation2 + %s535]]
        %s537 = sadd.s32 %s525, 6
        %s538 = sld [smem:[#allocation2 + %s537]]
        %s539 = sadd.s32 %s525, 7
        %s540 = sld [smem:[#allocation2 + %s539]]
        %s541 = sadd.s32 %s525, 8
        %s542 = sld [smem:[#allocation2 + %s541]]
        %s543 = sld [smem:[#allocation4 + %s525]]
        %s544 = sld [smem:[#allocation4 + %s527]]
        %s545 = sld [smem:[#allocation4 + %s529]]
        %s546 = sld [smem:[#allocation4 + %s531]]
        %s547 = sld [smem:[#allocation4 + %s533]]
        %s548 = sld [smem:[#allocation4 + %s535]]
        %s549 = sld [smem:[#allocation6 + %s525]]
        %s550 = sld [smem:[#allocation6 + %s527]]
        %s551 = sld [smem:[#allocation6 + %s529]]
        %s552 = sld [smem:[#allocation6 + %s531]]
        %s553 = sld [smem:[#allocation6 + %s533]]
        %s554 = sld [smem:[#allocation6 + %s535]]
        %s555 = sld [smem:[#allocation6 + %s537]]
        %s556 = sld [smem:[#allocation6 + %s539]]
        %s557 = sld [smem:[#allocation6 + %s541]]
        %s558 = sadd.s32 %s525, 9
        %s559 = sld [smem:[#allocation6 + %s558]]
        %s560 = sadd.s32 %s525, 10
        %s561 = sld [smem:[#allocation6 + %s560]]
        %s562 = sadd.s32 %s525, 11
        %s563 = sld [smem:[#allocation6 + %s562]]
        %v564 = vld [vmem:[%s491] sm:$0x3]
        %v565 = vld [vmem:[%s498] sm:$0x3]
        %v566 = vld [vmem:[%s502] sm:$0x3]
        %s567 = smul.u32 %s28, 256
        %s568 = scvt.s32.f32 %s567
        %v569 = vlaneseq
        %v570 = vshrl.u32 %v569, 7
        %v571 = vcvt.s32.f32 %v570
        %v572 = vlaneseq
        %v573 = vand.u32 %v572, 127
        %v574 = vcvt.s32.f32 %v573
        %v575 = vmul.f32 %v571, 128.0
        %v576 = vstv %s568
        %v577 = vadd.f32 %v576, %v575
        %v578 = vadd.f32 %v577, %v574
        %v579 = vadd.f32 %v578, 0.5
        %v580 = vmul.f32 %v579, 0.0625
        %v581 = vfloor.f32 %v580
        %v582 = vmul.f32 %v581, 16.0
        %v583 = vsub.f32 %v578, %v582
        %vm584 = vcmp.lt.f32.partialorder %v583, 0.0
        %v585 = vsub.f32 %v581, 1.0
        %vm586 = vcmp.ge.f32.partialorder %v583, 16.0
        %v587 = vadd.f32 %v581, 1.0
        %v588 = vsel %vm586, %v587, %v581
        %v589 = vsel %vm584, %v585, %v588
        %v590 = vadd.f32 %v583, 16.0
        %v591 = vsub.f32 %v583, 16.0
        %v592 = vsel %vm586, %v591, %v583
        %v593 = vsel %vm584, %v590, %v592
        %v594 = vstv %s526
        %v595 = vmul.f32 %v594, %v593
        %v596 = vstv %s528
        %v597 = vmul.f32 %v596, %v589
        %v598 = vadd.f32 %v595, %v597
        %v599 = vstv %s530
        %v600 = vadd.f32 %v598, %v599
        %v601 = vstv %s532
        %v602 = vmul.f32 %v601, %v593
        %v603 = vstv %s534
        %v604 = vmul.f32 %v603, %v589
        %v605 = vadd.f32 %v602, %v604
        %v606 = vstv %s536
        %v607 = vadd.f32 %v605, %v606
        %v608 = vstv %s538
        %v609 = vmul.f32 %v608, %v593
        %v610 = vstv %s540
        %v611 = vmul.f32 %v610, %v589
        %v612 = vadd.f32 %v609, %v611
        %v613 = vstv %s542
        %v614 = vadd.f32 %v612, %v613
        %v615 = vmul.f32 %v565, %v600
        %v616 = vmul.f32 %v565, %v607
        %v617 = vmul.f32 %v565, %v614
        %v618 = vmul.f32 %v564, %v615
        %v619 = vmul.f32 %v564, %v616
        %v620 = vmul.f32 %v564, %v617
        %v621 = vsub.f32 %v564, 1.0
        %v622 = vmul.f32 %v621, 0.5
        %v623 = vsub.f32 %v620, %v622
        %v624 = vsub.f32 %v623, 0.5
        %v625 = vmul.f32 %v618, %v618
        %v626 = vmul.f32 %v619, %v619
        %v627 = vadd.f32 %v625, %v626
        %v628 = vmul.f32 %v624, %v624
        %v629 = vadd.f32 %v627, %v628
        %v630 = vrsqrt.pop %v629
        %v631 = vmul.f32 %v630, %v629
        %v632 = vmul.f32 %v631, %v630
        %v633 = vmul.f32 0.5, %v632
        %v634 = vsub.f32 1.5, %v633
        %v635 = vmul.f32 %v630, %v634
        %v636 = vmul.f32 %v629, %v635
        %vm637 = vcmp.eq.f32.partialorder %v629, inf
        %v638 = vsel %vm637, %v629, %v636
        %vm639 = vcmp.eq.f32.partialorder %v629, 0.0
        %v640 = vand.u32 %v629, 2147483648
        %v641 = vsel %vm639, %v640, %v638
        %v642 = vstv %s549
        %v643 = vmul.f32 %v642, %v618
        %v644 = vstv %s550
        %v645 = vmul.f32 %v644, %v619
        %v646 = vadd.f32 %v643, %v645
        %v647 = vstv %s551
        %v648 = vmul.f32 %v647, %v623
        %v649 = vadd.f32 %v646, %v648
        %v650 = vstv %s559
        %v651 = vadd.f32 %v649, %v650
        %v652 = vstv %s552
        %v653 = vmul.f32 %v652, %v618
        %v654 = vstv %s553
        %v655 = vmul.f32 %v654, %v619
        %v656 = vadd.f32 %v653, %v655
        %v657 = vstv %s554
        %v658 = vmul.f32 %v657, %v623
        %v659 = vadd.f32 %v656, %v658
        %v660 = vstv %s561
        %v661 = vadd.f32 %v659, %v660
        %v662 = vstv %s555
        %v663 = vmul.f32 %v662, %v618
        %v664 = vstv %s556
        %v665 = vmul.f32 %v664, %v619
        %v666 = vadd.f32 %v663, %v665
        %v667 = vstv %s557
        %v668 = vmul.f32 %v667, %v623
        %v669 = vadd.f32 %v666, %v668
        %v670 = vstv %s563
        %v671 = vadd.f32 %v669, %v670
        %v672 = vsub.f32 %v671, 0.5
        %v673 = vmul.f32 %v651, %v651
        %v674 = vmul.f32 %v661, %v661
        %v675 = vadd.f32 %v673, %v674
        %v676 = vmul.f32 %v672, %v672
        %v677 = vadd.f32 %v675, %v676
        %v678 = vrsqrt.pop %v677
        %v679 = vmul.f32 %v678, %v677
        %v680 = vmul.f32 %v679, %v678
        %v681 = vmul.f32 0.5, %v680
        %v682 = vsub.f32 1.5, %v681
        %v683 = vmul.f32 %v678, %v682
        %v684 = vmul.f32 %v677, %v683
        %vm685 = vcmp.eq.f32.partialorder %v677, inf
        %v686 = vsel %vm685, %v677, %v684
        %vm687 = vcmp.eq.f32.partialorder %v677, 0.0
        %v688 = vand.u32 %v677, 2147483648
        %v689 = vsel %vm687, %v688, %v686
        %v690 = vsub.f32 %v641, 1.0
        %v691 = vmul.f32 %v690, 0.01010101
        %v692 = vsub.f32 %v689, 1.0
        %v693 = vmul.f32 %v692, 0.01010101
        %v694 = vmul.f32 %v642, %v615
        %v695 = vmul.f32 %v644, %v616
        %v696 = vadd.f32 %v694, %v695
        %v697 = vmul.f32 %v647, %v617
        %v698 = vadd.f32 %v696, %v697
        %v699 = vmul.f32 %v652, %v615
        %v700 = vmul.f32 %v654, %v616
        %v701 = vadd.f32 %v699, %v700
        %v702 = vmul.f32 %v657, %v617
        %v703 = vadd.f32 %v701, %v702
        %v704 = vmul.f32 %v662, %v615
        %v705 = vmul.f32 %v664, %v616
        %v706 = vadd.f32 %v704, %v705
        %v707 = vmul.f32 %v667, %v617
        %v708 = vadd.f32 %v706, %v707
        %v709 = vmul.f32 %v691, 99.0
        %v710 = vadd.f32 %v709, 1.0
        %v711 = vmul.f32 %v692, 0.5
        %v712 = vadd.f32 %v671, %v711
        %v713 = vrcp.pop %v712
        %v714 = vmul.f32 %v712, %v713
        %v715 = vsub.f32 2.0, %v714
        %v716 = vmul.f32 %v713, %v715
        %v717 = vstv %s543
        %v718 = vmul.f32 %v717, %v651
        %v719 = vstv %s544
        %v720 = vmul.f32 %v719, %v661
        %v721 = vadd.f32 %v718, %v720
        %v722 = vstv %s545
        %v723 = vmul.f32 %v722, %v712
        %v724 = vadd.f32 %v721, %v723
        %v725 = vmul.f32 %v724, %v716
        %v726 = vstv %s546
        %v727 = vmul.f32 %v726, %v651
        %v728 = vstv %s547
        %v729 = vmul.f32 %v728, %v661
        %v730 = vadd.f32 %v727, %v729
        %v731 = vstv %s548
        %v732 = vmul.f32 %v731, %v712
        %v733 = vadd.f32 %v730, %v732
        %v734 = vmul.f32 %v733, %v716
        %vm735 = vcmp.gt.f32.partialorder %v566, 0.5
        %v736 = vsel %vm735, %v593, %v725
        %v737 = vsel %vm735, %v589, %v734
        %v738 = vmul.f32 %v736, 0.06666667
        %v739 = vsub.f32 %v738, 0.5
        %v740 = vmul.f32 %v739, 2.0
        %741 = vst [vmem:[%s510] sm:$0x3] %v740
        %v742 = vmul.f32 %v737, 0.06666667
        %v743 = vsub.f32 %v742, 0.5
        %v744 = vmul.f32 %v743, 2.0
        %s745 = scalar_lea.vmem %s510, 2
        %746 = vst [vmem:[%s745] sm:$0x3] %v744
        %v747 = vadd.f32 %v736, 12582912.0
        %v748 = vsub.f32 %v747, 12582912.0
        %v749 = vadd.f32 %v737, 12582912.0
        %v750 = vsub.f32 %v749, 12582912.0
        %v751 = vmul.f32 %v750, 16.0
        %v752 = vadd.f32 %v748, %v751
        %v753 = vcvt.f32.s32.to.zero.pseudo %v752
        %754 = vst [vmem:[%s517] sm:$0x3] %v753
        %v755 = vmul.f32 %v710, %v698
        %v756 = vadd.f32 %v755, %v650
        %757 = vst [vmem:[%s469] sm:$0x3] %v756
        %v758 = vmul.f32 %v710, %v703
        %v759 = vadd.f32 %v758, %v660
        %s760 = scalar_lea.vmem %s469, 2 [#allocation7]
        %761 = vst [vmem:[%s760] sm:$0x3] %v759
        %v762 = vmul.f32 %v710, %v708
        %v763 = vadd.f32 %v762, %v670
        %s764 = scalar_lea.vmem %s469, 4 [#allocation7]
        %765 = vst [vmem:[%s764] sm:$0x3] %v763
        %v766 = vmul.f32 %v693, 99.0
        %v767 = vadd.f32 %v766, 1.0
        %768 = vst [vmem:[%s524] sm:$0x3] %v767
        %769 = vst [vmem:[%s484] sm:$0x3] %v615
        %s770 = scalar_lea.vmem %s484, 2 [#allocation8]
        %771 = vst [vmem:[%s770] sm:$0x3] %v616
        %s772 = scalar_lea.vmem %s484, 4 [#allocation8]
        %773 = vst [vmem:[%s772] sm:$0x3] %v617
        %p774 = scmp.lt.s32.totalorder %s29, 7
        %s775 = scalar_select %p774, %s29, 7
        %p776 = scmp.lt.s32.totalorder %s28, 0
        %s777 = scalar_select %p776, %s28, 0
        %s778 = smul.addr %s775, 2
        %s779 = sadd.s32 %s777, %s778
        %s780 = smul.addr %s779, 2
        %s781 = scalar_lea.vmem %s6, %s780
        %p782 = scmp.lt.s32.totalorder %s29, 7
        %s783 = scalar_select %p782, %s29, 7
        %p784 = scmp.lt.s32.totalorder %s28, 0
        %s785 = scalar_select %p784, %s28, 0
        %s786 = sadd.s32 %s785, %s783
        %s787 = smul.addr %s786, 2
        %s788 = scalar_lea.vmem %s7, %s787
        %s789 = sand.u32 %s247, 1
        %s790 = sand.u32 %s247, 1
        %s791 = smul.addr %s790, 6
        %s792 = scalar_lea.vmem [#allocation7], %s791
        %p793 = scmp.lt.s32.totalorder %s29, 7
        %s794 = scalar_select %p793, %s29, 7
        %p795 = scmp.lt.s32.totalorder %s28, 0
        %s796 = scalar_select %p795, %s28, 0
        %s797 = sadd.s32 %s796, %s794
        %s798 = smul.addr %s797, 2
        %s799 = scalar_lea.vmem %s9, %s798
        %s800 = sand.u32 %s303, 1
        %s801 = sand.u32 %s303, 1
        %s802 = smul.addr %s801, 6
        %s803 = scalar_lea.vmem [#allocation8], %s802
        // Predicated region
        $region57: #{omni_dibr_forward.1} parent=43 // pred_check
          %p804 = pneg %p201
        $region58: #{omni_dibr_forward.1} parent=43 // pred_check_branch
          %806 = sbr.rel (%p804) target = $region60
        $region59: #{omni_dibr_forward.1} parent=43 // pred_region
          _
        $region60: #{omni_dibr_forward.1} parent=43 // pred_fallthru
          _
        // Predicated region
        $region61: #{omni_dibr_forward.1} parent=43 // pred_check
          %p807 = pneg %p229
        $region62: #{omni_dibr_forward.1} parent=43 // pred_check_branch
          %809 = sbr.rel (%p807) target = $region64
        $region63: #{omni_dibr_forward.1} parent=43 // pred_region
          _
        $region64: #{omni_dibr_forward.1} parent=43 // pred_fallthru
          _
        // Predicated region
        $region65: #{omni_dibr_forward.1} parent=43 // pred_check
          %p810 = pneg %p257
        $region66: #{omni_dibr_forward.1} parent=43 // pred_check_branch
          %812 = sbr.rel (%p810) target = $region68
        $region67: #{omni_dibr_forward.1} parent=43 // pred_region
          %s813 = sadd.s32 %s28, %s29
          %s814 = smul.addr %s813, 2
          %s815 = scalar_lea.vmem %s8, %s814
          // Predicated region
          $region69: #{omni_dibr_forward.1} parent=67 // pred_check
            _
          $region70: #{omni_dibr_forward.1} parent=67 // pred_check_branch
            %817 = sbr.rel (0) target = $region72
          $region71: #{omni_dibr_forward.1} parent=67 // pred_region
            // Predicated region
            $region73: #{omni_dibr_forward.1} parent=71 // pred_check
              _
            $region74: #{omni_dibr_forward.1} parent=71 // pred_check_branch
              %819 = sbr.rel target = $region76
            $region75: #{omni_dibr_forward.1} parent=71 // pred_region
              // Predicated region
              $region88: #{omni_dibr_forward.1} parent=75 // pred_check
                _
              $region89: #{omni_dibr_forward.1} parent=75 // pred_check_branch
                %839 = sbr.rel (0) target = $region91
              $region90: #{omni_dibr_forward.1} parent=75 // pred_region
                %s841 = ssub.s32 4, 1
                loop: start=0, step=1, limit=1
                $region92: #{omni_dibr_forward.1} parent=90 // loop_pre_header
                  _
                $region93: #{omni_dibr_forward.1} parent=90 // loop_header
                  %s843 = sphi 0, %s847
                  %p844 = scmp.ge.s32.totalorder %s843, 1
                  %s848 = sphi %s792, %s792
                  %s849 = sphi %s815, %s815
                $region94: #{omni_dibr_forward.1} parent=90 // loop_header_branch
                  %846 = sbr.rel (%p844) target = $region98
                $region95: #{omni_dibr_forward.1} parent=90 // loop_body
                  %v850 = vld [vmem:[%s848] sm:%s841]
                  %851 = vst [vmem:[%s849] sm:%s841] %v850
                  %v852 = vld [vmem:[%s848 + $0x2] sm:%s841]
                  %853 = vst [vmem:[%s849 + $0x10] sm:%s841] %v852
                  %v854 = vld [vmem:[%s848 + $0x4] sm:%s841]
                  %855 = vst [vmem:[%s849 + $0x20] sm:%s841] %v854
                $region96: #{omni_dibr_forward.1} parent=90 // loop_footer
                  %s847 = sadd.s32 1, %s843
                $region97: #{omni_dibr_forward.1} parent=90 // loop_footer_branch
                  %842 = sbr.rel target = $region93
                $region98: #{omni_dibr_forward.1} parent=90 // loop_exit
                  _
              $region91: #{omni_dibr_forward.1} parent=75 // pred_fallthru
                _
            $region76: #{omni_dibr_forward.1} parent=71 // pred_fallthru
              _
            // Predicated region
            $region77: #{omni_dibr_forward.1} parent=71 // pred_check
              _
            $region78: #{omni_dibr_forward.1} parent=71 // pred_check_branch
              %821 = sbr.rel (0) target = $region80
            $region79: #{omni_dibr_forward.1} parent=71 // pred_region
              %s823 = ssub.s32 4, 1
              loop: start=0, step=1, limit=1
              $region81: #{omni_dibr_forward.1} parent=79 // loop_pre_header
                _
              $region82: #{omni_dibr_forward.1} parent=79 // loop_header
                %s825 = sphi 0, %s829
                %p826 = scmp.ge.s32.totalorder %s825, 1
                %s830 = sphi %s792, %s792
                %s831 = sphi %s815, %s815
              $region83: #{omni_dibr_forward.1} parent=79 // loop_header_branch
                %828 = sbr.rel (%p826) target = $region87
              $region84: #{omni_dibr_forward.1} parent=79 // loop_body
                %v832 = vld [vmem:[%s830] sm:%s823]
                %833 = vst [vmem:[%s831] sm:%s823] %v832
                %v834 = vld [vmem:[%s830 + $0x2] sm:%s823]
                %835 = vst [vmem:[%s831 + $0x10] sm:%s823] %v834
                %v836 = vld [vmem:[%s830 + $0x4] sm:%s823]
                %837 = vst [vmem:[%s831 + $0x20] sm:%s823] %v836
              $region85: #{omni_dibr_forward.1} parent=79 // loop_footer
                %s829 = sadd.s32 1, %s825
              $region86: #{omni_dibr_forward.1} parent=79 // loop_footer_branch
                %824 = sbr.rel target = $region82
              $region87: #{omni_dibr_forward.1} parent=79 // loop_exit
                _
            $region80: #{omni_dibr_forward.1} parent=71 // pred_fallthru
              _
          $region72: #{omni_dibr_forward.1} parent=67 // pred_fallthru
            _
          %856 = vnop
        $region68: #{omni_dibr_forward.1} parent=43 // pred_fallthru
          _
        // Predicated region
        $region99: #{omni_dibr_forward.1} parent=43 // pred_check
          %p857 = pneg %p285
        $region100: #{omni_dibr_forward.1} parent=43 // pred_check_branch
          %859 = sbr.rel (%p857) target = $region102
        $region101: #{omni_dibr_forward.1} parent=43 // pred_region
          _
        $region102: #{omni_dibr_forward.1} parent=43 // pred_fallthru
          _
        // Predicated region
        $region103: #{omni_dibr_forward.1} parent=43 // pred_check
          %p860 = pneg %p313
        $region104: #{omni_dibr_forward.1} parent=43 // pred_check_branch
          %862 = sbr.rel (%p860) target = $region106
        $region105: #{omni_dibr_forward.1} parent=43 // pred_region
          %s863 = sadd.s32 %s28, %s29
          %s864 = smul.addr %s863, 2
          %s865 = scalar_lea.vmem %s10, %s864
          // Predicated region
          $region107: #{omni_dibr_forward.1} parent=105 // pred_check
            _
          $region108: #{omni_dibr_forward.1} parent=105 // pred_check_branch
            %867 = sbr.rel (0) target = $region110
          $region109: #{omni_dibr_forward.1} parent=105 // pred_region
            // Predicated region
            $region111: #{omni_dibr_forward.1} parent=109 // pred_check
              _
            $region112: #{omni_dibr_forward.1} parent=109 // pred_check_branch
              %869 = sbr.rel target = $region114
            $region113: #{omni_dibr_forward.1} parent=109 // pred_region
              // Predicated region
              $region126: #{omni_dibr_forward.1} parent=113 // pred_check
                _
              $region127: #{omni_dibr_forward.1} parent=113 // pred_check_branch
                %889 = sbr.rel (0) target = $region129
              $region128: #{omni_dibr_forward.1} parent=113 // pred_region
                %s891 = ssub.s32 4, 1
                loop: start=0, step=1, limit=1
                $region130: #{omni_dibr_forward.1} parent=128 // loop_pre_header
                  _
                $region131: #{omni_dibr_forward.1} parent=128 // loop_header
                  %s893 = sphi 0, %s897
                  %p894 = scmp.ge.s32.totalorder %s893, 1
                  %s898 = sphi %s803, %s803
                  %s899 = sphi %s865, %s865
                $region132: #{omni_dibr_forward.1} parent=128 // loop_header_branch
                  %896 = sbr.rel (%p894) target = $region136
                $region133: #{omni_dibr_forward.1} parent=128 // loop_body
                  %v900 = vld [vmem:[%s898] sm:%s891]
                  %901 = vst [vmem:[%s899] sm:%s891] %v900
                  %v902 = vld [vmem:[%s898 + $0x2] sm:%s891]
                  %903 = vst [vmem:[%s899 + $0x10] sm:%s891] %v902
                  %v904 = vld [vmem:[%s898 + $0x4] sm:%s891]
                  %905 = vst [vmem:[%s899 + $0x20] sm:%s891] %v904
                $region134: #{omni_dibr_forward.1} parent=128 // loop_footer
                  %s897 = sadd.s32 1, %s893
                $region135: #{omni_dibr_forward.1} parent=128 // loop_footer_branch
                  %892 = sbr.rel target = $region131
                $region136: #{omni_dibr_forward.1} parent=128 // loop_exit
                  _
              $region129: #{omni_dibr_forward.1} parent=113 // pred_fallthru
                _
            $region114: #{omni_dibr_forward.1} parent=109 // pred_fallthru
              _
            // Predicated region
            $region115: #{omni_dibr_forward.1} parent=109 // pred_check
              _
            $region116: #{omni_dibr_forward.1} parent=109 // pred_check_branch
              %871 = sbr.rel (0) target = $region118
            $region117: #{omni_dibr_forward.1} parent=109 // pred_region
              %s873 = ssub.s32 4, 1
              loop: start=0, step=1, limit=1
              $region119: #{omni_dibr_forward.1} parent=117 // loop_pre_header
                _
              $region120: #{omni_dibr_forward.1} parent=117 // loop_header
                %s875 = sphi 0, %s879
                %p876 = scmp.ge.s32.totalorder %s875, 1
                %s880 = sphi %s803, %s803
                %s881 = sphi %s865, %s865
              $region121: #{omni_dibr_forward.1} parent=117 // loop_header_branch
                %878 = sbr.rel (%p876) target = $region125
              $region122: #{omni_dibr_forward.1} parent=117 // loop_body
                %v882 = vld [vmem:[%s880] sm:%s873]
                %883 = vst [vmem:[%s881] sm:%s873] %v882
                %v884 = vld [vmem:[%s880 + $0x2] sm:%s873]
                %885 = vst [vmem:[%s881 + $0x10] sm:%s873] %v884
                %v886 = vld [vmem:[%s880 + $0x4] sm:%s873]
                %887 = vst [vmem:[%s881 + $0x20] sm:%s873] %v886
              $region123: #{omni_dibr_forward.1} parent=117 // loop_footer
                %s879 = sadd.s32 1, %s875
              $region124: #{omni_dibr_forward.1} parent=117 // loop_footer_branch
                %874 = sbr.rel target = $region120
              $region125: #{omni_dibr_forward.1} parent=117 // loop_exit
                _
            $region118: #{omni_dibr_forward.1} parent=109 // pred_fallthru
              _
          $region110: #{omni_dibr_forward.1} parent=105 // pred_fallthru
            _
          %906 = vnop
        $region106: #{omni_dibr_forward.1} parent=43 // pred_fallthru
          _
      $region44: #{omni_dibr_forward.1} parent=5 // pred_fallthru
        _
      %p907 = scmp.le.s32.totalorder 2, %s19
      // Predicated region
      $region137: #{omni_dibr_forward.1} parent=5 // pred_check
        %p908 = pneg %p907
      $region138: #{omni_dibr_forward.1} parent=5 // pred_check_branch
        %910 = sbr.rel (%p908) target = $region140
      $region139: #{omni_dibr_forward.1} parent=5 // pred_region
        %s911 = ssub.s32 %s19, 2
        // Predicated region
        $region141: #{omni_dibr_forward.1} parent=139 // pred_check
          %p912 = pneg %p207
        $region142: #{omni_dibr_forward.1} parent=139 // pred_check_branch
          %914 = sbr.rel (%p912) target = $region144
        $region143: #{omni_dibr_forward.1} parent=139 // pred_region
          %p915 = scmp.lt.s32.totalorder %s31, 7
          %s916 = scalar_select %p915, %s31, 7
          %p917 = scmp.lt.s32.totalorder %s30, 0
          %s918 = scalar_select %p917, %s30, 0
          %s919 = smul.addr %s916, 2
          %s920 = sadd.s32 %s918, %s919
          %s921 = smul.addr %s920, 2
          %s922 = scalar_lea.vmem %s6, %s921
        $region144: #{omni_dibr_forward.1} parent=139 // pred_fallthru
          _
        // Predicated region
        $region145: #{omni_dibr_forward.1} parent=139 // pred_check
          %p923 = pneg %p235
        $region146: #{omni_dibr_forward.1} parent=139 // pred_check_branch
          %925 = sbr.rel (%p923) target = $region148
        $region147: #{omni_dibr_forward.1} parent=139 // pred_region
          %p926 = scmp.lt.s32.totalorder %s31, 7
          %s927 = scalar_select %p926, %s31, 7
          %p928 = scmp.lt.s32.totalorder %s30, 0
          %s929 = scalar_select %p928, %s30, 0
          %s930 = sadd.s32 %s929, %s927
          %s931 = smul.addr %s930, 2
          %s932 = scalar_lea.vmem %s7, %s931
        $region148: #{omni_dibr_forward.1} parent=139 // pred_fallthru
          _
        // Predicated region
        $region149: #{omni_dibr_forward.1} parent=139 // pred_check
          %p933 = pneg %p263
        $region150: #{omni_dibr_forward.1} parent=139 // pred_check_branch
          %935 = sbr.rel (%p933) target = $region152
        $region151: #{omni_dibr_forward.1} parent=139 // pred_region
          %s936 = sand.u32 %s248, 1
          %s937 = sand.u32 %s248, 1
          %s938 = smul.addr %s937, 6
          %s939 = scalar_lea.vmem [#allocation7], %s938
        $region152: #{omni_dibr_forward.1} parent=139 // pred_fallthru
          _
        // Predicated region
        $region153: #{omni_dibr_forward.1} parent=139 // pred_check
          %p940 = pneg %p291
        $region154: #{omni_dibr_forward.1} parent=139 // pred_check_branch
          %942 = sbr.rel (%p940) target = $region156
        $region155: #{omni_dibr_forward.1} parent=139 // pred_region
          %p943 = scmp.lt.s32.totalorder %s31, 7
          %s944 = scalar_select %p943, %s31, 7
          %p945 = scmp.lt.s32.totalorder %s30, 0
          %s946 = scalar_select %p945, %s30, 0
          %s947 = sadd.s32 %s946, %s944
          %s948 = smul.addr %s947, 2
          %s949 = scalar_lea.vmem %s9, %s948
        $region156: #{omni_dibr_forward.1} parent=139 // pred_fallthru
          _
        // Predicated region
        $region157: #{omni_dibr_forward.1} parent=139 // pred_check
          %p950 = pneg %p319
        $region158: #{omni_dibr_forward.1} parent=139 // pred_check_branch
          %952 = sbr.rel (%p950) target = $region160
        $region159: #{omni_dibr_forward.1} parent=139 // pred_region
          %s953 = sand.u32 %s304, 1
          %s954 = sand.u32 %s304, 1
          %s955 = smul.addr %s954, 6
          %s956 = scalar_lea.vmem [#allocation8], %s955
        $region160: #{omni_dibr_forward.1} parent=139 // pred_fallthru
          _
      $region140: #{omni_dibr_forward.1} parent=5 // pred_fallthru
        _
    $region6: #{omni_dibr_forward.1} parent=1 // loop_footer
      %s23 = sadd.s32 1, %s19
    $region7: #{omni_dibr_forward.1} parent=1 // loop_footer_branch
      %18 = sbr.rel target = $region3
    $region8: #{omni_dibr_forward.1} parent=1 // loop_exit
      _
    %957 = vsyncpa [#allocation3], 1
    %s958 = scalar_lea.sflag [#allocation3], 1
    %959 = vsyncpa %s958, 1
    %960 = vsyncpa [#allocation5], 1

</llo_original>
